<compile_context>
chip_gen: v5e
topology: v5e:2x2
jax: 0.10.0
libtpu: 0.0.40
codegen_flags: <defaults>
</compile_context>

<pallas_src>
import jax
import jax.numpy as jnp
from jax.experimental import pallas as pl
from jax.experimental.pallas import tpu as pltpu


def _round_up(n, m):
    return ((n + m - 1) // m) * m


def _pick_tb(B, tb=None, tb_max=1024):
    """Pick the batch-tile size.

    Invariants (so every BlockSpec satisfies TPU layout rules):
      * single-tile case: TB == B_pad  (block == full array dims)
      * multi-tile case : TB is a multiple of 128 (lane-dense output blocks)
        and of 16 (bf16 sublane packing of the x tile).
    Auto mode aims for >=2 tiles when B >= 256 so both v7x TensorCores get work.
    """
    single = _round_up(max(B, 16), 16)          # one tile covering the batch
    if tb is None:
        if B > 2 * tb_max:
            return tb_max
        if B >= 256:                            # >=2 grid steps (v7x megacore)
            return min(_round_up(pl.cdiv(B, 2), 128), tb_max)
        return single
    tb = max(16, int(tb))
    if tb >= single:
        return single
    return min(_round_up(tb, 128), tb_max)


def _resident_spec(shape):
    """Constant-index (VMEM-resident) operand; single-buffered when supported."""
    idx = lambda i: (0,) * len(shape)
    try:
        return pl.BlockSpec(shape, idx, pipeline_mode=pl.Buffered(1))
    except TypeError:  # older JAX without pipeline_mode on BlockSpec
        return pl.BlockSpec(shape, idx)


def discriminator_kernel(x_ref, w1_ref, b1_ref, w2_ref, b2_ref, w3_ref, b3_ref,
                         o_ref):
    # Layer 1: (TB,784)bf16 @ (784,512)bf16 -> f32 acc, +bias, LeakyReLU(0.2)
    h1 = jnp.dot(x_ref[...], w1_ref[...], preferred_element_type=jnp.float32)
    h1 = h1 + b1_ref[...]
    h1 = jnp.where(h1 > 0, h1, 0.2 * h1)

    # Layer 2: (TB,512)bf16 @ (512,256)bf16 -> f32 acc, +bias, LeakyReLU(0.2)
    h2 = jnp.dot(h1.astype(jnp.bfloat16), w2_ref[...],
                 preferred_element_type=jnp.float32)
    h2 = h2 + b2_ref[...]
    h2 = jnp.where(h2 > 0, h2, 0.2 * h2)

    # Layer 3 (out_features = 1): contract the feature dim of w3 (1,256) with
    # the feature dim of h2 (TB,256) -> (1, TB), i.e. directly lane-dense.
    logit = jax.lax.dot_general(w3_ref[...], h2, (((1,), (1,)), ((), ())),
                                preferred_element_type=jnp.float32)
    logit = logit + b3_ref[...]
    o_ref[...] = (1.0 / (1.0 + jnp.exp(-logit))).astype(o_ref.dtype)  # sigmoid


def discriminator_forward(x, params, *, tb=None):
    """x: (B, 1, 28, 28) or (B, 784) float32 (NCHW, like PyTorch).
    Returns (B, 1) float32 probabilities."""
    w1t, b1, w2t, b2, w3t, b3 = params
    B = x.shape[0]
    x_flat = x.reshape(B, 28 * 28).astype(jnp.bfloat16)  # == x.view(-1, 784)

    TB = _pick_tb(B, tb)
    B_pad = _round_up(B, TB)
    if B_pad != B:
        x_flat = jnp.pad(x_flat, ((0, B_pad - B), (0, 0)))
    num_tiles = B_pad // TB

    # bf16 weights for the two MXU matmuls; layer-3 weight as an f32 row.
    w1b = w1t.astype(jnp.bfloat16)
    w2b = w2t.astype(jnp.bfloat16)
    w3_row = w3t.reshape(1, 256).astype(jnp.float32)
    b1f = b1.astype(jnp.float32)
    b2f = b2.astype(jnp.float32)
    b3f = b3.reshape(1, 1).astype(jnp.float32)

    out_row = pl.pallas_call(
        discriminator_kernel,
        out_shape=jax.ShapeDtypeStruct((1, B_pad), jnp.float32),
        grid=(num_tiles,),
        in_specs=[
            pl.BlockSpec((TB, 28 * 28), lambda i: (i, 0)),  # x tile (pipelined)
            _resident_spec(w1b.shape), _resident_spec(b1f.shape),
            _resident_spec(w2b.shape), _resident_spec(b2f.shape),
            _resident_spec(w3_row.shape), _resident_spec(b3f.shape),
        ],
        # Lane-dense output row: one (1, TB) block per grid step.
        out_specs=pl.BlockSpec((1, TB), lambda i: (0, i)),
        compiler_params=pltpu.CompilerParams(
            dimension_semantics=("parallel",),
            vmem_limit_bytes=32 << 20,   # ~10 MiB working set at TB=1024
        ),
    )(x_flat, w1b, b1f, w2b, b2f, w3_row, b3f)

    return out_row[0, :B].reshape(B, 1)


def init_params(key):
    """Deterministic params. PyTorch Linear weight is (out, in); layers 1-2 are
    stored transposed (in, out) so the kernel computes x @ Wt; layer 3 is kept
    as (256, 1) and reshaped to a (1, 256) row in the wrapper."""
    k1, k2, k3, k4, k5, k6 = jax.random.split(key, 6)

    def lin(kw, kb, fan_in, fan_out):
        bound = 1.0 / jnp.sqrt(fan_in)
        w = jax.random.uniform(kw, (fan_in, fan_out), jnp.float32, -bound, bound)
        b = jax.random.uniform(kb, (1, fan_out), jnp.float32, -bound, bound)
        return w, b

    w1t, b1 = lin(k1, k2, 28 * 28, 512)
    w2t, b2 = lin(k3, k4, 512, 256)
    w3t, b3 = lin(k5, k6, 256, 1)
    return (w1t, b1, w2t, b2, w3t, b3)


def reference_forward(x, params):
    """Pure f32 reference matching the PyTorch module's semantics."""
    w1t, b1, w2t, b2, w3t, b3 = params
    h = x.reshape(x.shape[0], 28 * 28)
    h = h @ w1t + b1
    h = jnp.where(h > 0, h, 0.2 * h)
    h = h @ w2t + b2
    h = jnp.where(h > 0, h, 0.2 * h)
    h = h @ w3t + b3
    return jax.nn.sigmoid(h)


if __name__ == "__main__":
    key = jax.random.PRNGKey(0)
    kx, kp = jax.random.split(key)
    params = init_params(kp)

    # Small single-tile case (NCHW input, like the PyTorch module).
    B = 4
    x = jax.random.normal(kx, (B, 1, 28, 28), dtype=jnp.float32)
    out = jax.block_until_ready(discriminator_forward(x, params))
    ref = reference_forward(x, params)
    assert out.shape == (B, 1)
    # bf16 matmul inputs with f32 accumulation -> loosened tolerance vs f32 ref.
    assert jnp.allclose(out, ref, atol=1e-2, rtol=0), "single-tile mismatch"

    # Multi-tile case: exercises batch tiling + padding, resident (single-
    # buffered) weights, lane-dense (1, TB) output blocks and the "parallel"
    # batch grid (2 tiles of 128 rows).
    B2 = 200
    x2 = jax.random.normal(jax.random.PRNGKey(1), (B2, 1, 28, 28),
                           dtype=jnp.float32)
    out2 = jax.block_until_ready(discriminator_forward(x2, params, tb=128))
    ref2 = reference_forward(x2, params)
    assert out2.shape == (B2, 1)
    assert jnp.allclose(out2, ref2, atol=1e-2, rtol=0), "multi-tile mismatch"

    print("KERNEL_OK")
</pallas_src>

<mosaic_0001>
module attributes {stable_mosaic.version = 11 : i64} {
  func.func @discriminator_kernel(%arg0: i32, %arg1: memref<16x784xbf16, #tpu.memory_space<vmem>>, %arg2: memref<784x512xbf16, #tpu.memory_space<vmem>>, %arg3: memref<1x512xf32, #tpu.memory_space<vmem>>, %arg4: memref<512x256xbf16, #tpu.memory_space<vmem>>, %arg5: memref<1x256xf32, #tpu.memory_space<vmem>>, %arg6: memref<1x256xf32, #tpu.memory_space<vmem>>, %arg7: memref<1x1xf32, #tpu.memory_space<vmem>>, %arg8: memref<1x16xf32, #tpu.memory_space<vmem>>) attributes {dimension_semantics = [#tpu.dimension_semantics<parallel>], iteration_bounds = array<i64: 1>, scalar_prefetch = 0 : i64, scratch_operands = 0 : i64, tpu.core_type = #tpu.core_type<tc>, window_params = [{transform_indices = @transform_0, window_bounds = array<i64: 16, 784>}, {pipeline_mode = #tpu.pipeline_mode<synchronous>, transform_indices = @transform_1, window_bounds = array<i64: 784, 512>}, {pipeline_mode = #tpu.pipeline_mode<synchronous>, transform_indices = @transform_2, window_bounds = array<i64: 1, 512>}, {pipeline_mode = #tpu.pipeline_mode<synchronous>, transform_indices = @transform_3, window_bounds = array<i64: 512, 256>}, {pipeline_mode = #tpu.pipeline_mode<synchronous>, transform_indices = @transform_4, window_bounds = array<i64: 1, 256>}, {pipeline_mode = #tpu.pipeline_mode<synchronous>, transform_indices = @transform_5, window_bounds = array<i64: 1, 256>}, {pipeline_mode = #tpu.pipeline_mode<synchronous>, transform_indices = @transform_6, window_bounds = array<i64: 1, 1>}, {transform_indices = @transform_7, window_bounds = array<i64: 1, 16>}]} {
    %c0 = arith.constant 0 : index
    %c0_0 = arith.constant 0 : index
    %0 = vector.load %arg1[%c0, %c0_0] : memref<16x784xbf16, #tpu.memory_space<vmem>>, vector<16x784xbf16>
    %c0_1 = arith.constant 0 : index
    %c0_2 = arith.constant 0 : index
    %1 = vector.load %arg2[%c0_1, %c0_2] : memref<784x512xbf16, #tpu.memory_space<vmem>>, vector<784x512xbf16>
    %cst = arith.constant dense<0.000000e+00> : vector<16x512xf32>
    %2 = tpu.matmul %0, %1, %cst {dimension_numbers = #tpu.dot_dimension_numbers<[1], [0], [0], [1], [0, 0, 1, 1], [], []>} : vector<16x784xbf16>, vector<784x512xbf16>, vector<16x512xf32> -> vector<16x512xf32>
    %c0_3 = arith.constant 0 : index
    %c0_4 = arith.constant 0 : index
    %3 = vector.load %arg3[%c0_3, %c0_4] : memref<1x512xf32, #tpu.memory_space<vmem>>, vector<1x512xf32>
    %4 = vector.broadcast %3 : vector<1x512xf32> to vector<16x512xf32>
    %5 = arith.addf %2, %4 : vector<16x512xf32>
    %cst_5 = arith.constant 0.000000e+00 : f32
    %6 = vector.broadcast %cst_5 : f32 to vector<16x512xf32>
    %7 = arith.cmpf ogt, %5, %6 : vector<16x512xf32>
    %cst_6 = arith.constant 2.000000e-01 : f32
    %8 = vector.broadcast %cst_6 : f32 to vector<16x512xf32>
    %9 = arith.mulf %8, %5 : vector<16x512xf32>
    %10 = arith.select %7, %5, %9 : vector<16x512xi1>, vector<16x512xf32>
    %11 = arith.truncf %10 : vector<16x512xf32> to vector<16x512xbf16>
    %c0_7 = arith.constant 0 : index
    %c0_8 = arith.constant 0 : index
    %12 = vector.load %arg4[%c0_7, %c0_8] : memref<512x256xbf16, #tpu.memory_space<vmem>>, vector<512x256xbf16>
    %cst_9 = arith.constant dense<0.000000e+00> : vector<16x256xf32>
    %13 = tpu.matmul %11, %12, %cst_9 {dimension_numbers = #tpu.dot_dimension_numbers<[1], [0], [0], [1], [0, 0, 1, 1], [], []>} : vector<16x512xbf16>, vector<512x256xbf16>, vector<16x256xf32> -> vector<16x256xf32>
    %c0_10 = arith.constant 0 : index
    %c0_11 = arith.constant 0 : index
    %14 = vector.load %arg5[%c0_10, %c0_11] : memref<1x256xf32, #tpu.memory_space<vmem>>, vector<1x256xf32>
    %15 = vector.broadcast %14 : vector<1x256xf32> to vector<16x256xf32>
    %16 = arith.addf %13, %15 : vector<16x256xf32>
    %cst_12 = arith.constant 0.000000e+00 : f32
    %17 = vector.broadcast %cst_12 : f32 to vector<16x256xf32>
    %18 = arith.cmpf ogt, %16, %17 : vector<16x256xf32>
    %cst_13 = arith.constant 2.000000e-01 : f32
    %19 = vector.broadcast %cst_13 : f32 to vector<16x256xf32>
    %20 = arith.mulf %19, %16 : vector<16x256xf32>
    %21 = arith.select %18, %16, %20 : vector<16x256xi1>, vector<16x256xf32>
    %c0_14 = arith.constant 0 : index
    %c0_15 = arith.constant 0 : index
    %22 = vector.load %arg6[%c0_14, %c0_15] : memref<1x256xf32, #tpu.memory_space<vmem>>, vector<1x256xf32>
    %cst_16 = arith.constant dense<0.000000e+00> : vector<1x16xf32>
    %23 = tpu.matmul %22, %21, %cst_16 {dimension_numbers = #tpu.dot_dimension_numbers<[1], [1], [0], [0], [0, 0, 1, 0], [], []>} : vector<1x256xf32>, vector<16x256xf32>, vector<1x16xf32> -> vector<1x16xf32>
    %c0_17 = arith.constant 0 : index
    %c0_18 = arith.constant 0 : index
    %24 = vector.load %arg7[%c0_17, %c0_18] : memref<1x1xf32, #tpu.memory_space<vmem>>, vector<1x1xf32>
    %25 = vector.broadcast %24 : vector<1x1xf32> to vector<1x16xf32>
    %26 = arith.addf %23, %25 : vector<1x16xf32>
    %cst_19 = arith.constant 0.000000e+00 : f32
    %27 = vector.broadcast %cst_19 : f32 to vector<1x16xf32>
    %28 = arith.subf %27, %26 : vector<1x16xf32>
    %29 = math.exp %28 : vector<1x16xf32>
    %cst_20 = arith.constant 1.000000e+00 : f32
    %30 = vector.broadcast %cst_20 : f32 to vector<1x16xf32>
    %31 = arith.addf %30, %29 : vector<1x16xf32>
    %cst_21 = arith.constant 1.000000e+00 : f32
    %32 = vector.broadcast %cst_21 : f32 to vector<1x16xf32>
    %33 = arith.divf %32, %31 : vector<1x16xf32>
    %c0_22 = arith.constant 0 : index
    %c0_23 = arith.constant 0 : index
    %34 = vector.load %arg8[%c0_22, %c0_23] : memref<1x16xf32, #tpu.memory_space<vmem>>, vector<1x16xf32>
    tpu.vector_store %arg8[%c0_22, %c0_23], %33 {strides = array<i32>} : memref<1x16xf32, #tpu.memory_space<vmem>>, vector<1x16xf32>,
    return
  }
  func.func @transform_0(%arg0: i32) -> (i32, i32) {
    %c0_i32 = arith.constant 0 : i32
    %c0_i32_0 = arith.constant 0 : i32
    return %arg0, %c0_i32 : i32, i32
  }
  func.func @transform_1(%arg0: i32) -> (i32, i32) {
    %c0_i32 = arith.constant 0 : i32
    %c0_i32_0 = arith.constant 0 : i32
    %c0_i32_1 = arith.constant 0 : i32
    return %c0_i32, %c0_i32_0 : i32, i32
  }
  func.func @transform_2(%arg0: i32) -> (i32, i32) {
    %c0_i32 = arith.constant 0 : i32
    %c0_i32_0 = arith.constant 0 : i32
    %c0_i32_1 = arith.constant 0 : i32
    return %c0_i32, %c0_i32_0 : i32, i32
  }
  func.func @transform_3(%arg0: i32) -> (i32, i32) {
    %c0_i32 = arith.constant 0 : i32
    %c0_i32_0 = arith.constant 0 : i32
    %c0_i32_1 = arith.constant 0 : i32
    return %c0_i32, %c0_i32_0 : i32, i32
  }
  func.func @transform_4(%arg0: i32) -> (i32, i32) {
    %c0_i32 = arith.constant 0 : i32
    %c0_i32_0 = arith.constant 0 : i32
    %c0_i32_1 = arith.constant 0 : i32
    return %c0_i32, %c0_i32_0 : i32, i32
  }
  func.func @transform_5(%arg0: i32) -> (i32, i32) {
    %c0_i32 = arith.constant 0 : i32
    %c0_i32_0 = arith.constant 0 : i32
    %c0_i32_1 = arith.constant 0 : i32
    return %c0_i32, %c0_i32_0 : i32, i32
  }
  func.func @transform_6(%arg0: i32) -> (i32, i32) {
    %c0_i32 = arith.constant 0 : i32
    %c0_i32_0 = arith.constant 0 : i32
    %c0_i32_1 = arith.constant 0 : i32
    return %c0_i32, %c0_i32_0 : i32, i32
  }
  func.func @transform_7(%arg0: i32) -> (i32, i32) {
    %c0_i32 = arith.constant 0 : i32
    %c0_i32_0 = arith.constant 0 : i32
    return %c0_i32, %arg0 : i32, i32
  }
}

</mosaic_0001>

<llo_original>
// kernel: tpu_custom_call.1
$region0: #{tpu_custom_call.1}
  #allocation0 [shape = 'u32[]', space=smem, size = 0x4, offset = 0x4, fixed_abs, tag = 'smem constant byte address 0x4 - core index']
  #allocation1 [shape = 'u32[72,128]{1,0:T(1,128)}', space=vmem, size = 0x9000, scoped, tag = 'internal scratch']
  #allocation2 [shape = 'f32[1,1]{1,0:T(1,128)S(1)}', space=vmem, size = 0x200, scoped, tag = 'scoped memory for tpu_custom_call.1']
  %s0 = inlined_call_operand.hbm [shape: bf16[16,784], index: 0, kind: input, shape index: {}]
  %s1 = inlined_call_operand.hbm [shape: bf16[784,512], index: 1, kind: input, shape index: {}]
  %s2 = inlined_call_operand.hbm [shape: f32[1,512], index: 2, kind: input, shape index: {}]
  %s3 = inlined_call_operand.hbm [shape: bf16[512,256], index: 3, kind: input, shape index: {}]
  %s4 = inlined_call_operand.vmem [shape: f32[1,256], index: 4, kind: input, shape index: {}]
  %s5 = inlined_call_operand.vmem [shape: f32[1,256], index: 5, kind: input, shape index: {}]
  %s6 = inlined_call_operand.<no memory space> [shape: f32[1,1], index: 6, kind: input, shape index: {}]
  %s7 = inlined_call_operand.hbm [shape: f32[1,16], index: 7, kind: output, shape index: {}]
  %s8 = sld [smem:[#allocation0]]
  $region54: #{tpu_custom_call.1} parent=0
    _
  %s10 = ssub.s32 1, %s8
  %s11 = scalar_select 0, %s10, %s8
  %v12 = vstv %s6
  %13 = vst [vmem:[#allocation2] sm:$0x1] %v12
  $region1: #{tpu_custom_call.1} parent=0
    #allocation3 [shape = 'u8[28672]{0}', space=vmem, size = 0x7000, scoped, tag = 'input window, operand 0, single buffered']
    #allocation4 [shape = 's32[1]{0}', space=sflag, size = 0x4, scoped, tag = 'scoped memory for tpu_custom_call.1']
    #allocation5 [shape = 's32[1]{0}', space=sflag, size = 0x4, scoped, tag = 'scoped memory for tpu_custom_call.1']
    #allocation6 [shape = 'u8[802816]{0}', space=vmem, size = 0xc4000, scoped, tag = 'input window, operand 1, single buffered']
    #allocation7 [shape = 's32[1]{0}', space=sflag, size = 0x4, scoped, tag = 'scoped memory for tpu_custom_call.1']
    #allocation8 [shape = 'u8[2048]{0}', space=vmem, size = 0x800, scoped, tag = 'input window, operand 2, single buffered']
    #allocation9 [shape = 'u8[262144]{0}', space=vmem, size = 0x40000, scoped, tag = 'input window, operand 3, single buffered']
    #allocation10 [shape = 's32[1]{0}', space=sflag, size = 0x4, scoped, tag = 'scoped memory for tpu_custom_call.1']
    #allocation11 [shape = 'u8[512]{0}', space=vmem, size = 0x400, scoped, tag = 'output window, operand 0, single buffered']
    %14 = vsyncpa [#allocation4], 0
    %15 = vsyncpa [#allocation7], 0
    %16 = vsyncpa [#allocation10], 0
    %17 = vsyncpa [#allocation5], 0
    // Predicated region
    $region2: #{tpu_custom_call.1} parent=1 // pred_check
      _
    $region3: #{tpu_custom_call.1} parent=1 // pred_check_branch
      %19 = sbr.rel (0) target = $region5
    $region4: #{tpu_custom_call.1} parent=1 // pred_region
      %21 = vsyncadd [#allocation4], 0
      %s22 = sshll.u32 %s0, 4
      %s23 = int_to_ptr.hbm [resolvable:$true] %s22
      %s24 = sshll.u32 [#allocation3], 4
      %s25 = int_to_ptr.vmem [resolvable:$true] %s24
      %30 = dma.hbm_to_vmem [thread:$0]  %s23, 896, %s25, [#allocation4], 448, 448, 28
    $region5: #{tpu_custom_call.1} parent=1 // pred_fallthru
      _
    // Predicated region
    $region6: #{tpu_custom_call.1} parent=1 // pred_check
      _
    $region7: #{tpu_custom_call.1} parent=1 // pred_check_branch
      %32 = sbr.rel (0) target = $region9
    $region8: #{tpu_custom_call.1} parent=1 // pred_region
      %34 = vsyncadd [#allocation7], 0
      %s35 = sshll.u32 %s1, 4
      %s36 = int_to_ptr.hbm [resolvable:$true] %s35
      %s37 = sshll.u32 [#allocation6], 4
      %s38 = int_to_ptr.vmem [resolvable:$true] %s37
      %43 = dma.hbm_to_vmem [thread:$0]  %s36, 25088, %s38, [#allocation7], 256, 256, 16
    $region9: #{tpu_custom_call.1} parent=1 // pred_fallthru
      _
    // Predicated region
    $region10: #{tpu_custom_call.1} parent=1 // pred_check
      _
    $region11: #{tpu_custom_call.1} parent=1 // pred_check_branch
      %45 = sbr.rel (0) target = $region13
    $region12: #{tpu_custom_call.1} parent=1 // pred_region
      %47 = vsyncadd [#allocation7], 0
      %s49 = sshll.u32 %s2, 4
      %s50 = int_to_ptr.hbm [resolvable:$true] %s49
      %s51 = sshll.u32 [#allocation8], 4
      %s52 = int_to_ptr.vmem [resolvable:$true] %s51
      %54 = dma.hbm_to_vmem [thread:$0]  %s50, 64, %s52, [#allocation7]
    $region13: #{tpu_custom_call.1} parent=1 // pred_fallthru
      _
    // Predicated region
    $region14: #{tpu_custom_call.1} parent=1 // pred_check
      _
    $region15: #{tpu_custom_call.1} parent=1 // pred_check_branch
      %56 = sbr.rel (0) target = $region17
    $region16: #{tpu_custom_call.1} parent=1 // pred_region
      %58 = vsyncadd [#allocation10], 0
      %s59 = sshll.u32 %s3, 4
      %s60 = int_to_ptr.hbm [resolvable:$true] %s59
      %s61 = sshll.u32 [#allocation9], 4
      %s62 = int_to_ptr.vmem [resolvable:$true] %s61
      %67 = dma.hbm_to_vmem [thread:$0]  %s60, 8192, %s62, [#allocation10], 128, 128, 8
    $region17: #{tpu_custom_call.1} parent=1 // pred_fallthru
      _
    // Predicated region
    $region18: #{tpu_custom_call.1} parent=1 // pred_check
      _
    $region19: #{tpu_custom_call.1} parent=1 // pred_check_branch
      %69 = sbr.rel (0) target = $region21
    $region20: #{tpu_custom_call.1} parent=1 // pred_region
      _
    $region21: #{tpu_custom_call.1} parent=1 // pred_fallthru
      _
    // Predicated region
    $region22: #{tpu_custom_call.1} parent=1 // pred_check
      _
    $region23: #{tpu_custom_call.1} parent=1 // pred_check_branch
      %71 = sbr.rel (0) target = $region25
    $region24: #{tpu_custom_call.1} parent=1 // pred_region
      _
    $region25: #{tpu_custom_call.1} parent=1 // pred_fallthru
      _
    // Predicated region
    $region26: #{tpu_custom_call.1} parent=1 // pred_check
      _
    $region27: #{tpu_custom_call.1} parent=1 // pred_check_branch
      %73 = sbr.rel (0) target = $region29
    $region28: #{tpu_custom_call.1} parent=1 // pred_region
      _
    $region29: #{tpu_custom_call.1} parent=1 // pred_fallthru
      _
    // Predicated region
    $region30: #{tpu_custom_call.1} parent=1 // pred_check
      _
    $region31: #{tpu_custom_call.1} parent=1 // pred_check_branch
      %75 = sbr.rel (0) target = $region33
    $region32: #{tpu_custom_call.1} parent=1 // pred_region
      %77 = dma.done [#allocation4], 896
    $region33: #{tpu_custom_call.1} parent=1 // pred_fallthru
      _
    // Predicated region
    $region34: #{tpu_custom_call.1} parent=1 // pred_check
      _
    $region35: #{tpu_custom_call.1} parent=1 // pred_check_branch
      %79 = sbr.rel (0) target = $region37
    $region36: #{tpu_custom_call.1} parent=1 // pred_region
      %81 = dma.done [#allocation7], 25088
    $region37: #{tpu_custom_call.1} parent=1 // pred_fallthru
      _
    // Predicated region
    $region38: #{tpu_custom_call.1} parent=1 // pred_check
      _
    $region39: #{tpu_custom_call.1} parent=1 // pred_check_branch
      %83 = sbr.rel (0) target = $region41
    $region40: #{tpu_custom_call.1} parent=1 // pred_region
      %85 = dma.done [#allocation7], 64
    $region41: #{tpu_custom_call.1} parent=1 // pred_fallthru
      _
    // Predicated region
    $region42: #{tpu_custom_call.1} parent=1 // pred_check
      _
    $region43: #{tpu_custom_call.1} parent=1 // pred_check_branch
      %87 = sbr.rel (0) target = $region45
    $region44: #{tpu_custom_call.1} parent=1 // pred_region
      %89 = dma.done [#allocation10], 8192
    $region45: #{tpu_custom_call.1} parent=1 // pred_fallthru
      _
    %v91 = vld [vmem:[#allocation3] sm:$0xff]
    %v92 = vld [vmem:[#allocation3 + $0x8] sm:$0xff]
    %v93 = vld [vmem:[#allocation3 + $0x10] sm:$0xff]
    %v94 = vld [vmem:[#allocation3 + $0x18] sm:$0xf]
    %v95 = vld [vmem:[#allocation3 + $0x1c] sm:$0xff]
    %v96 = vld [vmem:[#allocation3 + $0x24] sm:$0xff]
    %v97 = vld [vmem:[#allocation3 + $0x2c] sm:$0xff]
    %v98 = vld [vmem:[#allocation3 + $0x34] sm:$0xf]
    %v99 = vld [vmem:[#allocation6] sm:$0xff]
    %v100 = vld [vmem:[#allocation6 + $0x8] sm:$0xff]
    %v101 = vld [vmem:[#allocation6 + $0x10] sm:$0xff]
    %v102 = vld [vmem:[#allocation6 + $0x18] sm:$0xff]
    %v103 = vld [vmem:[#allocation6 + $0x20] sm:$0xff]
    %v104 = vld [vmem:[#allocation6 + $0x28] sm:$0xff]
    %v105 = vld [vmem:[#allocation6 + $0x30] sm:$0xff]
    %v106 = vld [vmem:[#allocation6 + $0x38] sm:$0xff]
    %v107 = vld [vmem:[#allocation6 + $0x40] sm:$0xff]
    %v108 = vld [vmem:[#allocation6 + $0x48] sm:$0xff]
    %v109 = vld [vmem:[#allocation6 + $0x50] sm:$0xff]
    %v110 = vld [vmem:[#allocation6 + $0x58] sm:$0xff]
    %v111 = vld [vmem:[#allocation6 + $0x60] sm:$0xff]
    %v112 = vld [vmem:[#allocation6 + $0x68] sm:$0xff]
    %v113 = vld [vmem:[#allocation6 + $0x70] sm:$0xff]
    %v114 = vld [vmem:[#allocation6 + $0x78] sm:$0xff]
    %v115 = vld [vmem:[#allocation6 + $0x80] sm:$0xff]
    %v116 = vld [vmem:[#allocation6 + $0x88] sm:$0xff]
    %v117 = vld [vmem:[#allocation6 + $0x90] sm:$0xff]
    %v118 = vld [vmem:[#allocation6 + $0x98] sm:$0xff]
    %v119 = vld [vmem:[#allocation6 + $0xa0] sm:$0xff]
    %v120 = vld [vmem:[#allocation6 + $0xa8] sm:$0xff]
    %v121 = vld [vmem:[#allocation6 + $0xb0] sm:$0xff]
    %v122 = vld [vmem:[#allocation6 + $0xb8] sm:$0xff]
    %v123 = vld [vmem:[#allocation6 + $0xc0] sm:$0xff]
    %v124 = vld [vmem:[#allocation6 + $0xc8] sm:$0xff]
    %v125 = vld [vmem:[#allocation6 + $0xd0] sm:$0xff]
    %v126 = vld [vmem:[#allocation6 + $0xd8] sm:$0xff]
    %v127 = vld [vmem:[#allocation6 + $0xe0] sm:$0xff]
    %v128 = vld [vmem:[#allocation6 + $0xe8] sm:$0xff]
    %v129 = vld [vmem:[#allocation6 + $0xf0] sm:$0xff]
    %v130 = vld [vmem:[#allocation6 + $0xf8] sm:$0xff]
    %v131 = vld [vmem:[#allocation6 + $0x100] sm:$0xff]
    %v132 = vld [vmem:[#allocation6 + $0x108] sm:$0xff]
    %v133 = vld [vmem:[#allocation6 + $0x110] sm:$0xff]
    %v134 = vld [vmem:[#allocation6 + $0x118] sm:$0xff]
    %v135 = vld [vmem:[#allocation6 + $0x120] sm:$0xff]
    %v136 = vld [vmem:[#allocation6 + $0x128] sm:$0xff]
    %v137 = vld [vmem:[#allocation6 + $0x130] sm:$0xff]
    %v138 = vld [vmem:[#allocation6 + $0x138] sm:$0xff]
    %v139 = vld [vmem:[#allocation6 + $0x140] sm:$0xff]
    %v140 = vld [vmem:[#allocation6 + $0x148] sm:$0xff]
    %v141 = vld [vmem:[#allocation6 + $0x150] sm:$0xff]
    %v142 = vld [vmem:[#allocation6 + $0x158] sm:$0xff]
    %v143 = vld [vmem:[#allocation6 + $0x160] sm:$0xff]
    %v144 = vld [vmem:[#allocation6 + $0x168] sm:$0xff]
    %v145 = vld [vmem:[#allocation6 + $0x170] sm:$0xff]
    %v146 = vld [vmem:[#allocation6 + $0x178] sm:$0xff]
    %v147 = vld [vmem:[#allocation6 + $0x180] sm:$0xff]
    %v148 = vld [vmem:[#allocation6 + $0x188] sm:$0xff]
    %v149 = vld [vmem:[#allocation6 + $0x190] sm:$0xff]
    %v150 = vld [vmem:[#allocation6 + $0x198] sm:$0xff]
    %v151 = vld [vmem:[#allocation6 + $0x1a0] sm:$0xff]
    %v152 = vld [vmem:[#allocation6 + $0x1a8] sm:$0xff]
    %v153 = vld [vmem:[#allocation6 + $0x1b0] sm:$0xff]
    %v154 = vld [vmem:[#allocation6 + $0x1b8] sm:$0xff]
    %v155 = vld [vmem:[#allocation6 + $0x1c0] sm:$0xff]
    %v156 = vld [vmem:[#allocation6 + $0x1c8] sm:$0xff]
    %v157 = vld [vmem:[#allocation6 + $0x1d0] sm:$0xff]
    %v158 = vld [vmem:[#allocation6 + $0x1d8] sm:$0xff]
    %v159 = vld [vmem:[#allocation6 + $0x1e0] sm:$0xff]
    %v160 = vld [vmem:[#allocation6 + $0x1e8] sm:$0xff]
    %v161 = vld [vmem:[#allocation6 + $0x1f0] sm:$0xff]
    %v162 = vld [vmem:[#allocation6 + $0x1f8] sm:$0xff]
    %v163 = vld [vmem:[#allocation6 + $0x200] sm:$0xff]
    %v164 = vld [vmem:[#allocation6 + $0x208] sm:$0xff]
    %v165 = vld [vmem:[#allocation6 + $0x210] sm:$0xff]
    %v166 = vld [vmem:[#allocation6 + $0x218] sm:$0xff]
    %v167 = vld [vmem:[#allocation6 + $0x220] sm:$0xff]
    %v168 = vld [vmem:[#allocation6 + $0x228] sm:$0xff]
    %v169 = vld [vmem:[#allocation6 + $0x230] sm:$0xff]
    %v170 = vld [vmem:[#allocation6 + $0x238] sm:$0xff]
    %v171 = vld [vmem:[#allocation6 + $0x240] sm:$0xff]
    %v172 = vld [vmem:[#allocation6 + $0x248] sm:$0xff]
    %v173 = vld [vmem:[#allocation6 + $0x250] sm:$0xff]
    %v174 = vld [vmem:[#allocation6 + $0x258] sm:$0xff]
    %v175 = vld [vmem:[#allocation6 + $0x260] sm:$0xff]
    %v176 = vld [vmem:[#allocation6 + $0x268] sm:$0xff]
    %v177 = vld [vmem:[#allocation6 + $0x270] sm:$0xff]
    %v178 = vld [vmem:[#allocation6 + $0x278] sm:$0xff]
    %v179 = vld [vmem:[#allocation6 + $0x280] sm:$0xff]
    %v180 = vld [vmem:[#allocation6 + $0x288] sm:$0xff]
    %v181 = vld [vmem:[#allocation6 + $0x290] sm:$0xff]
    %v182 = vld [vmem:[#allocation6 + $0x298] sm:$0xff]
    %v183 = vld [vmem:[#allocation6 + $0x2a0] sm:$0xff]
    %v184 = vld [vmem:[#allocation6 + $0x2a8] sm:$0xff]
    %v185 = vld [vmem:[#allocation6 + $0x2b0] sm:$0xff]
    %v186 = vld [vmem:[#allocation6 + $0x2b8] sm:$0xff]
    %v187 = vld [vmem:[#allocation6 + $0x2c0] sm:$0xff]
    %v188 = vld [vmem:[#allocation6 + $0x2c8] sm:$0xff]
    %v189 = vld [vmem:[#allocation6 + $0x2d0] sm:$0xff]
    %v190 = vld [vmem:[#allocation6 + $0x2d8] sm:$0xff]
    %v191 = vld [vmem:[#allocation6 + $0x2e0] sm:$0xff]
    %v192 = vld [vmem:[#allocation6 + $0x2e8] sm:$0xff]
    %v193 = vld [vmem:[#allocation6 + $0x2f0] sm:$0xff]
    %v194 = vld [vmem:[#allocation6 + $0x2f8] sm:$0xff]
    %v195 = vld [vmem:[#allocation6 + $0x300] sm:$0xff]
    %v196 = vld [vmem:[#allocation6 + $0x308] sm:$0xff]
    %v197 = vld [vmem:[#allocation6 + $0x310] sm:$0xff]
    %v198 = vld [vmem:[#allocation6 + $0x318] sm:$0xff]
    %v199 = vld [vmem:[#allocation6 + $0x320] sm:$0xff]
    %v200 = vld [vmem:[#allocation6 + $0x328] sm:$0xff]
    %v201 = vld [vmem:[#allocation6 + $0x330] sm:$0xff]
    %v202 = vld [vmem:[#allocation6 + $0x338] sm:$0xff]
    %v203 = vld [vmem:[#allocation6 + $0x340] sm:$0xff]
    %v204 = vld [vmem:[#allocation6 + $0x348] sm:$0xff]
    %v205 = vld [vmem:[#allocation6 + $0x350] sm:$0xff]
    %v206 = vld [vmem:[#allocation6 + $0x358] sm:$0xff]
    %v207 = vld [vmem:[#allocation6 + $0x360] sm:$0xff]
    %v208 = vld [vmem:[#allocation6 + $0x368] sm:$0xff]
    %v209 = vld [vmem:[#allocation6 + $0x370] sm:$0xff]
    %v210 = vld [vmem:[#allocation6 + $0x378] sm:$0xff]
    %v211 = vld [vmem:[#allocation6 + $0x380] sm:$0xff]
    %v212 = vld [vmem:[#allocation6 + $0x388] sm:$0xff]
    %v213 = vld [vmem:[#allocation6 + $0x390] sm:$0xff]
    %v214 = vld [vmem:[#allocation6 + $0x398] sm:$0xff]
    %v215 = vld [vmem:[#allocation6 + $0x3a0] sm:$0xff]
    %v216 = vld [vmem:[#allocation6 + $0x3a8] sm:$0xff]
    %v217 = vld [vmem:[#allocation6 + $0x3b0] sm:$0xff]
    %v218 = vld [vmem:[#allocation6 + $0x3b8] sm:$0xff]
    %v219 = vld [vmem:[#allocation6 + $0x3c0] sm:$0xff]
    %v220 = vld [vmem:[#allocation6 + $0x3c8] sm:$0xff]
    %v221 = vld [vmem:[#allocation6 + $0x3d0] sm:$0xff]
    %v222 = vld [vmem:[#allocation6 + $0x3d8] sm:$0xff]
    %v223 = vld [vmem:[#allocation6 + $0x3e0] sm:$0xff]
    %v224 = vld [vmem:[#allocation6 + $0x3e8] sm:$0xff]
    %v225 = vld [vmem:[#allocation6 + $0x3f0] sm:$0xff]
    %v226 = vld [vmem:[#allocation6 + $0x3f8] sm:$0xff]
    %v227 = vld [vmem:[#allocation6 + $0x400] sm:$0xff]
    %v228 = vld [vmem:[#allocation6 + $0x408] sm:$0xff]
    %v229 = vld [vmem:[#allocation6 + $0x410] sm:$0xff]
    %v230 = vld [vmem:[#allocation6 + $0x418] sm:$0xff]
    %v231 = vld [vmem:[#allocation6 + $0x420] sm:$0xff]
    %v232 = vld [vmem:[#allocation6 + $0x428] sm:$0xff]
    %v233 = vld [vmem:[#allocation6 + $0x430] sm:$0xff]
    %v234 = vld [vmem:[#allocation6 + $0x438] sm:$0xff]
    %v235 = vld [vmem:[#allocation6 + $0x440] sm:$0xff]
    %v236 = vld [vmem:[#allocation6 + $0x448] sm:$0xff]
    %v237 = vld [vmem:[#allocation6 + $0x450] sm:$0xff]
    %v238 = vld [vmem:[#allocation6 + $0x458] sm:$0xff]
    %v239 = vld [vmem:[#allocation6 + $0x460] sm:$0xff]
    %v240 = vld [vmem:[#allocation6 + $0x468] sm:$0xff]
    %v241 = vld [vmem:[#allocation6 + $0x470] sm:$0xff]
    %v242 = vld [vmem:[#allocation6 + $0x478] sm:$0xff]
    %v243 = vld [vmem:[#allocation6 + $0x480] sm:$0xff]
    %v244 = vld [vmem:[#allocation6 + $0x488] sm:$0xff]
    %v245 = vld [vmem:[#allocation6 + $0x490] sm:$0xff]
    %v246 = vld [vmem:[#allocation6 + $0x498] sm:$0xff]
    %v247 = vld [vmem:[#allocation6 + $0x4a0] sm:$0xff]
    %v248 = vld [vmem:[#allocation6 + $0x4a8] sm:$0xff]
    %v249 = vld [vmem:[#allocation6 + $0x4b0] sm:$0xff]
    %v250 = vld [vmem:[#allocation6 + $0x4b8] sm:$0xff]
    %v251 = vld [vmem:[#allocation6 + $0x4c0] sm:$0xff]
    %v252 = vld [vmem:[#allocation6 + $0x4c8] sm:$0xff]
    %v253 = vld [vmem:[#allocation6 + $0x4d0] sm:$0xff]
    %v254 = vld [vmem:[#allocation6 + $0x4d8] sm:$0xff]
    %v255 = vld [vmem:[#allocation6 + $0x4e0] sm:$0xff]
    %v256 = vld [vmem:[#allocation6 + $0x4e8] sm:$0xff]
    %v257 = vld [vmem:[#allocation6 + $0x4f0] sm:$0xff]
    %v258 = vld [vmem:[#allocation6 + $0x4f8] sm:$0xff]
    %v259 = vld [vmem:[#allocation6 + $0x500] sm:$0xff]
    %v260 = vld [vmem:[#allocation6 + $0x508] sm:$0xff]
    %v261 = vld [vmem:[#allocation6 + $0x510] sm:$0xff]
    %v262 = vld [vmem:[#allocation6 + $0x518] sm:$0xff]
    %v263 = vld [vmem:[#allocation6 + $0x520] sm:$0xff]
    %v264 = vld [vmem:[#allocation6 + $0x528] sm:$0xff]
    %v265 = vld [vmem:[#allocation6 + $0x530] sm:$0xff]
    %v266 = vld [vmem:[#allocation6 + $0x538] sm:$0xff]
    %v267 = vld [vmem:[#allocation6 + $0x540] sm:$0xff]
    %v268 = vld [vmem:[#allocation6 + $0x548] sm:$0xff]
    %v269 = vld [vmem:[#allocation6 + $0x550] sm:$0xff]
    %v270 = vld [vmem:[#allocation6 + $0x558] sm:$0xff]
    %v271 = vld [vmem:[#allocation6 + $0x560] sm:$0xff]
    %v272 = vld [vmem:[#allocation6 + $0x568] sm:$0xff]
    %v273 = vld [vmem:[#allocation6 + $0x570] sm:$0xff]
    %v274 = vld [vmem:[#allocation6 + $0x578] sm:$0xff]
    %v275 = vld [vmem:[#allocation6 + $0x580] sm:$0xff]
    %v276 = vld [vmem:[#allocation6 + $0x588] sm:$0xff]
    %v277 = vld [vmem:[#allocation6 + $0x590] sm:$0xff]
    %v278 = vld [vmem:[#allocation6 + $0x598] sm:$0xff]
    %v279 = vld [vmem:[#allocation6 + $0x5a0] sm:$0xff]
    %v280 = vld [vmem:[#allocation6 + $0x5a8] sm:$0xff]
    %v281 = vld [vmem:[#allocation6 + $0x5b0] sm:$0xff]
    %v282 = vld [vmem:[#allocation6 + $0x5b8] sm:$0xff]
    %v283 = vld [vmem:[#allocation6 + $0x5c0] sm:$0xff]
    %v284 = vld [vmem:[#allocation6 + $0x5c8] sm:$0xff]
    %v285 = vld [vmem:[#allocation6 + $0x5d0] sm:$0xff]
    %v286 = vld [vmem:[#allocation6 + $0x5d8] sm:$0xff]
    %v287 = vld [vmem:[#allocation6 + $0x5e0] sm:$0xff]
    %v288 = vld [vmem:[#allocation6 + $0x5e8] sm:$0xff]
    %v289 = vld [vmem:[#allocation6 + $0x5f0] sm:$0xff]
    %v290 = vld [vmem:[#allocation6 + $0x5f8] sm:$0xff]
    %v291 = vld [vmem:[#allocation6 + $0x600] sm:$0xff]
    %v292 = vld [vmem:[#allocation6 + $0x608] sm:$0xff]
    %v293 = vld [vmem:[#allocation6 + $0x610] sm:$0xff]
    %v294 = vld [vmem:[#allocation6 + $0x618] sm:$0xff]
    %v295 = vld [vmem:[#allocation8] sm:$0xf]
    %v297 = vperm.slane %v295, 0
    %v298 = vperm.slane %v295, 1
    %v299 = vperm.slane %v295, 2
    %v300 = vperm.slane %v295, 3
    %v313 = vunpack.c.l.b16 %v91
    %v314 = vunpack.c.h.b16 %v91
    %v315 = vunpack.c.l.b16 %v92
    %v316 = vunpack.c.h.b16 %v92
    %v317 = vunpack.c.l.b16 %v93
    %v318 = vunpack.c.h.b16 %v93
    %v319 = vunpack.c.l.b16 %v94
    %v320 = vunpack.c.l.b16 %v95
    %v321 = vunpack.c.h.b16 %v95
    %v322 = vunpack.c.l.b16 %v96
    %v323 = vunpack.c.h.b16 %v96
    %v324 = vunpack.c.l.b16 %v97
    %v325 = vunpack.c.h.b16 %v97
    %v326 = vunpack.c.l.b16 %v98
    %v327 = vpack.c.b16 %v320, %v313
    %v328 = vpack.c.b16 %v321, %v314
    %v329 = vpack.c.b16 %v322, %v315
    %v330 = vpack.c.b16 %v323, %v316
    %v331 = vpack.c.b16 %v324, %v317
    %v332 = vpack.c.b16 %v325, %v318
    %v333 = vpack.c.b16 %v326, %v319
    %v536 = vunpack.c.l.b16 %v99
    %v537 = vunpack.c.h.b16 %v99
    %v538 = vunpack.c.l.b16 %v100
    %v539 = vunpack.c.h.b16 %v100
    %v540 = vunpack.c.l.b16 %v101
    %v541 = vunpack.c.h.b16 %v101
    %v542 = vunpack.c.l.b16 %v102
    %v543 = vunpack.c.h.b16 %v102
    %v544 = vunpack.c.l.b16 %v103
    %v545 = vunpack.c.h.b16 %v103
    %v546 = vunpack.c.l.b16 %v104
    %v547 = vunpack.c.h.b16 %v104
    %v548 = vunpack.c.l.b16 %v105
    %v549 = vunpack.c.h.b16 %v105
    %v550 = vunpack.c.l.b16 %v106
    %v551 = vunpack.c.h.b16 %v106
    %v552 = vunpack.c.l.b16 %v107
    %v553 = vunpack.c.h.b16 %v107
    %v554 = vunpack.c.l.b16 %v108
    %v555 = vunpack.c.h.b16 %v108
    %v556 = vunpack.c.l.b16 %v109
    %v557 = vunpack.c.h.b16 %v109
    %v558 = vunpack.c.l.b16 %v110
    %v559 = vunpack.c.h.b16 %v110
    %v560 = vunpack.c.l.b16 %v111
    %v561 = vunpack.c.h.b16 %v111
    %v562 = vunpack.c.l.b16 %v112
    %v563 = vunpack.c.h.b16 %v112
    %v564 = vunpack.c.l.b16 %v113
    %v565 = vunpack.c.h.b16 %v113
    %v566 = vunpack.c.l.b16 %v114
    %v567 = vunpack.c.h.b16 %v114
    %v568 = vunpack.c.l.b16 %v115
    %v569 = vunpack.c.h.b16 %v115
    %v570 = vunpack.c.l.b16 %v116
    %v571 = vunpack.c.h.b16 %v116
    %v572 = vunpack.c.l.b16 %v117
    %v573 = vunpack.c.h.b16 %v117
    %v574 = vunpack.c.l.b16 %v118
    %v575 = vunpack.c.h.b16 %v118
    %v576 = vunpack.c.l.b16 %v119
    %v577 = vunpack.c.h.b16 %v119
    %v578 = vunpack.c.l.b16 %v120
    %v579 = vunpack.c.h.b16 %v120
    %v580 = vunpack.c.l.b16 %v121
    %v581 = vunpack.c.h.b16 %v121
    %v582 = vunpack.c.l.b16 %v122
    %v583 = vunpack.c.h.b16 %v122
    %v584 = vunpack.c.l.b16 %v123
    %v585 = vunpack.c.h.b16 %v123
    %v586 = vunpack.c.l.b16 %v124
    %v587 = vunpack.c.h.b16 %v124
    %v588 = vunpack.c.l.b16 %v125
    %v589 = vunpack.c.h.b16 %v125
    %v590 = vunpack.c.l.b16 %v126
    %v591 = vunpack.c.h.b16 %v126
    %v592 = vunpack.c.l.b16 %v127
    %v593 = vunpack.c.h.b16 %v127
    %v594 = vunpack.c.l.b16 %v128
    %v595 = vunpack.c.h.b16 %v128
    %v596 = vunpack.c.l.b16 %v129
    %v597 = vunpack.c.h.b16 %v129
    %v598 = vunpack.c.l.b16 %v130
    %v599 = vunpack.c.h.b16 %v130
    %v600 = vunpack.c.l.b16 %v131
    %v601 = vunpack.c.h.b16 %v131
    %v602 = vunpack.c.l.b16 %v132
    %v603 = vunpack.c.h.b16 %v132
    %v604 = vunpack.c.l.b16 %v133
    %v605 = vunpack.c.h.b16 %v133
    %v606 = vunpack.c.l.b16 %v134
    %v607 = vunpack.c.h.b16 %v134
    %v608 = vunpack.c.l.b16 %v135
    %v609 = vunpack.c.h.b16 %v135
    %v610 = vunpack.c.l.b16 %v136
    %v611 = vunpack.c.h.b16 %v136
    %v612 = vunpack.c.l.b16 %v137
    %v613 = vunpack.c.h.b16 %v137
    %v614 = vunpack.c.l.b16 %v138
    %v615 = vunpack.c.h.b16 %v138
    %v616 = vunpack.c.l.b16 %v139
    %v617 = vunpack.c.h.b16 %v139
    %v618 = vunpack.c.l.b16 %v140
    %v619 = vunpack.c.h.b16 %v140
    %v620 = vunpack.c.l.b16 %v141
    %v621 = vunpack.c.h.b16 %v141
    %v622 = vunpack.c.l.b16 %v142
    %v623 = vunpack.c.h.b16 %v142
    %v624 = vunpack.c.l.b16 %v143
    %v625 = vunpack.c.h.b16 %v143
    %v626 = vunpack.c.l.b16 %v144
    %v627 = vunpack.c.h.b16 %v144
    %v628 = vunpack.c.l.b16 %v145
    %v629 = vunpack.c.h.b16 %v145
    %v630 = vunpack.c.l.b16 %v146
    %v631 = vunpack.c.h.b16 %v146
    %v632 = vunpack.c.l.b16 %v147
    %v633 = vunpack.c.h.b16 %v147
    %v634 = vunpack.c.l.b16 %v148
    %v635 = vunpack.c.h.b16 %v148
    %v636 = vunpack.c.l.b16 %v149
    %v637 = vunpack.c.h.b16 %v149
    %v638 = vunpack.c.l.b16 %v150
    %v639 = vunpack.c.h.b16 %v150
    %v640 = vunpack.c.l.b16 %v151
    %v641 = vunpack.c.h.b16 %v151
    %v642 = vunpack.c.l.b16 %v152
    %v643 = vunpack.c.h.b16 %v152
    %v644 = vunpack.c.l.b16 %v153
    %v645 = vunpack.c.h.b16 %v153
    %v646 = vunpack.c.l.b16 %v154
    %v647 = vunpack.c.h.b16 %v154
    %v648 = vunpack.c.l.b16 %v155
    %v649 = vunpack.c.h.b16 %v155
    %v650 = vunpack.c.l.b16 %v156
    %v651 = vunpack.c.h.b16 %v156
    %v652 = vunpack.c.l.b16 %v157
    %v653 = vunpack.c.h.b16 %v157
    %v654 = vunpack.c.l.b16 %v158
    %v655 = vunpack.c.h.b16 %v158
    %v656 = vunpack.c.l.b16 %v159
    %v657 = vunpack.c.h.b16 %v159
    %v658 = vunpack.c.l.b16 %v160
    %v659 = vunpack.c.h.b16 %v160
    %v660 = vunpack.c.l.b16 %v161
    %v661 = vunpack.c.h.b16 %v161
    %v662 = vunpack.c.l.b16 %v162
    %v663 = vunpack.c.h.b16 %v162
    %v664 = vunpack.c.l.b16 %v163
    %v665 = vunpack.c.h.b16 %v163
    %v666 = vunpack.c.l.b16 %v164
    %v667 = vunpack.c.h.b16 %v164
    %v668 = vunpack.c.l.b16 %v165
    %v669 = vunpack.c.h.b16 %v165
    %v670 = vunpack.c.l.b16 %v166
    %v671 = vunpack.c.h.b16 %v166
    %v672 = vunpack.c.l.b16 %v167
    %v673 = vunpack.c.h.b16 %v167
    %v674 = vunpack.c.l.b16 %v168
    %v675 = vunpack.c.h.b16 %v168
    %v676 = vunpack.c.l.b16 %v169
    %v677 = vunpack.c.h.b16 %v169
    %v678 = vunpack.c.l.b16 %v170
    %v679 = vunpack.c.h.b16 %v170
    %v680 = vunpack.c.l.b16 %v171
    %v681 = vunpack.c.h.b16 %v171
    %v682 = vunpack.c.l.b16 %v172
    %v683 = vunpack.c.h.b16 %v172
    %v684 = vunpack.c.l.b16 %v173
    %v685 = vunpack.c.h.b16 %v173
    %v686 = vunpack.c.l.b16 %v174
    %v687 = vunpack.c.h.b16 %v174
    %v688 = vunpack.c.l.b16 %v175
    %v689 = vunpack.c.h.b16 %v175
    %v690 = vunpack.c.l.b16 %v176
    %v691 = vunpack.c.h.b16 %v176
    %v692 = vunpack.c.l.b16 %v177
    %v693 = vunpack.c.h.b16 %v177
    %v694 = vunpack.c.l.b16 %v178
    %v695 = vunpack.c.h.b16 %v178
    %v696 = vunpack.c.l.b16 %v179
    %v697 = vunpack.c.h.b16 %v179
    %v698 = vunpack.c.l.b16 %v180
    %v699 = vunpack.c.h.b16 %v180
    %v700 = vunpack.c.l.b16 %v181
    %v701 = vunpack.c.h.b16 %v181
    %v702 = vunpack.c.l.b16 %v182
    %v703 = vunpack.c.h.b16 %v182
    %v704 = vunpack.c.l.b16 %v183
    %v705 = vunpack.c.h.b16 %v183
    %v706 = vunpack.c.l.b16 %v184
    %v707 = vunpack.c.h.b16 %v184
    %v708 = vunpack.c.l.b16 %v185
    %v709 = vunpack.c.h.b16 %v185
    %v710 = vunpack.c.l.b16 %v186
    %v711 = vunpack.c.h.b16 %v186
    %v712 = vunpack.c.l.b16 %v187
    %v713 = vunpack.c.h.b16 %v187
    %v714 = vunpack.c.l.b16 %v188
    %v715 = vunpack.c.h.b16 %v188
    %v716 = vunpack.c.l.b16 %v189
    %v717 = vunpack.c.h.b16 %v189
    %v718 = vunpack.c.l.b16 %v190
    %v719 = vunpack.c.h.b16 %v190
    %v720 = vunpack.c.l.b16 %v191
    %v721 = vunpack.c.h.b16 %v191
    %v722 = vunpack.c.l.b16 %v192
    %v723 = vunpack.c.h.b16 %v192
    %v724 = vunpack.c.l.b16 %v193
    %v725 = vunpack.c.h.b16 %v193
    %v726 = vunpack.c.l.b16 %v194
    %v727 = vunpack.c.h.b16 %v194
    %v728 = vunpack.c.l.b16 %v195
    %v729 = vunpack.c.h.b16 %v195
    %v730 = vunpack.c.l.b16 %v196
    %v731 = vunpack.c.h.b16 %v196
    %v732 = vunpack.c.l.b16 %v197
    %v733 = vunpack.c.h.b16 %v197
    %v734 = vunpack.c.l.b16 %v198
    %v735 = vunpack.c.h.b16 %v198
    %v736 = vunpack.c.l.b16 %v199
    %v737 = vunpack.c.h.b16 %v199
    %v738 = vunpack.c.l.b16 %v200
    %v739 = vunpack.c.h.b16 %v200
    %v740 = vunpack.c.l.b16 %v201
    %v741 = vunpack.c.h.b16 %v201
    %v742 = vunpack.c.l.b16 %v202
    %v743 = vunpack.c.h.b16 %v202
    %v744 = vunpack.c.l.b16 %v203
    %v745 = vunpack.c.h.b16 %v203
    %v746 = vunpack.c.l.b16 %v204
    %v747 = vunpack.c.h.b16 %v204
    %v748 = vunpack.c.l.b16 %v205
    %v749 = vunpack.c.h.b16 %v205
    %v750 = vunpack.c.l.b16 %v206
    %v751 = vunpack.c.h.b16 %v206
    %v752 = vunpack.c.l.b16 %v207
    %v753 = vunpack.c.h.b16 %v207
    %v754 = vunpack.c.l.b16 %v208
    %v755 = vunpack.c.h.b16 %v208
    %v756 = vunpack.c.l.b16 %v209
    %v757 = vunpack.c.h.b16 %v209
    %v758 = vunpack.c.l.b16 %v210
    %v759 = vunpack.c.h.b16 %v210
    %v760 = vunpack.c.l.b16 %v211
    %v761 = vunpack.c.h.b16 %v211
    %v762 = vunpack.c.l.b16 %v212
    %v763 = vunpack.c.h.b16 %v212
    %v764 = vunpack.c.l.b16 %v213
    %v765 = vunpack.c.h.b16 %v213
    %v766 = vunpack.c.l.b16 %v214
    %v767 = vunpack.c.h.b16 %v214
    %v768 = vunpack.c.l.b16 %v215
    %v769 = vunpack.c.h.b16 %v215
    %v770 = vunpack.c.l.b16 %v216
    %v771 = vunpack.c.h.b16 %v216
    %v772 = vunpack.c.l.b16 %v217
    %v773 = vunpack.c.h.b16 %v217
    %v774 = vunpack.c.l.b16 %v218
    %v775 = vunpack.c.h.b16 %v218
    %v776 = vunpack.c.l.b16 %v219
    %v777 = vunpack.c.h.b16 %v219
    %v778 = vunpack.c.l.b16 %v220
    %v779 = vunpack.c.h.b16 %v220
    %v780 = vunpack.c.l.b16 %v221
    %v781 = vunpack.c.h.b16 %v221
    %v782 = vunpack.c.l.b16 %v222
    %v783 = vunpack.c.h.b16 %v222
    %v784 = vunpack.c.l.b16 %v223
    %v785 = vunpack.c.h.b16 %v223
    %v786 = vunpack.c.l.b16 %v224
    %v787 = vunpack.c.h.b16 %v224
    %v788 = vunpack.c.l.b16 %v225
    %v789 = vunpack.c.h.b16 %v225
    %v790 = vunpack.c.l.b16 %v226
    %v791 = vunpack.c.h.b16 %v226
    %v792 = vunpack.c.l.b16 %v227
    %v793 = vunpack.c.h.b16 %v227
    %v794 = vunpack.c.l.b16 %v228
    %v795 = vunpack.c.h.b16 %v228
    %v796 = vunpack.c.l.b16 %v229
    %v797 = vunpack.c.h.b16 %v229
    %v798 = vunpack.c.l.b16 %v230
    %v799 = vunpack.c.h.b16 %v230
    %v800 = vunpack.c.l.b16 %v231
    %v801 = vunpack.c.h.b16 %v231
    %v802 = vunpack.c.l.b16 %v232
    %v803 = vunpack.c.h.b16 %v232
    %v804 = vunpack.c.l.b16 %v233
    %v805 = vunpack.c.h.b16 %v233
    %v806 = vunpack.c.l.b16 %v234
    %v807 = vunpack.c.h.b16 %v234
    %v808 = vunpack.c.l.b16 %v235
    %v809 = vunpack.c.h.b16 %v235
    %v810 = vunpack.c.l.b16 %v236
    %v811 = vunpack.c.h.b16 %v236
    %v812 = vunpack.c.l.b16 %v237
    %v813 = vunpack.c.h.b16 %v237
    %v814 = vunpack.c.l.b16 %v238
    %v815 = vunpack.c.h.b16 %v238
    %v816 = vunpack.c.l.b16 %v239
    %v817 = vunpack.c.h.b16 %v239
    %v818 = vunpack.c.l.b16 %v240
    %v819 = vunpack.c.h.b16 %v240
    %v820 = vunpack.c.l.b16 %v241
    %v821 = vunpack.c.h.b16 %v241
    %v822 = vunpack.c.l.b16 %v242
    %v823 = vunpack.c.h.b16 %v242
    %v824 = vunpack.c.l.b16 %v243
    %v825 = vunpack.c.h.b16 %v243
    %v826 = vunpack.c.l.b16 %v244
    %v827 = vunpack.c.h.b16 %v244
    %v828 = vunpack.c.l.b16 %v245
    %v829 = vunpack.c.h.b16 %v245
    %v830 = vunpack.c.l.b16 %v246
    %v831 = vunpack.c.h.b16 %v246
    %v832 = vunpack.c.l.b16 %v247
    %v833 = vunpack.c.h.b16 %v247
    %v834 = vunpack.c.l.b16 %v248
    %v835 = vunpack.c.h.b16 %v248
    %v836 = vunpack.c.l.b16 %v249
    %v837 = vunpack.c.h.b16 %v249
    %v838 = vunpack.c.l.b16 %v250
    %v839 = vunpack.c.h.b16 %v250
    %v840 = vunpack.c.l.b16 %v251
    %v841 = vunpack.c.h.b16 %v251
    %v842 = vunpack.c.l.b16 %v252
    %v843 = vunpack.c.h.b16 %v252
    %v844 = vunpack.c.l.b16 %v253
    %v845 = vunpack.c.h.b16 %v253
    %v846 = vunpack.c.l.b16 %v254
    %v847 = vunpack.c.h.b16 %v254
    %v848 = vunpack.c.l.b16 %v255
    %v849 = vunpack.c.h.b16 %v255
    %v850 = vunpack.c.l.b16 %v256
    %v851 = vunpack.c.h.b16 %v256
    %v852 = vunpack.c.l.b16 %v257
    %v853 = vunpack.c.h.b16 %v257
    %v854 = vunpack.c.l.b16 %v258
    %v855 = vunpack.c.h.b16 %v258
    %v856 = vunpack.c.l.b16 %v259
    %v857 = vunpack.c.h.b16 %v259
    %v858 = vunpack.c.l.b16 %v260
    %v859 = vunpack.c.h.b16 %v260
    %v860 = vunpack.c.l.b16 %v261
    %v861 = vunpack.c.h.b16 %v261
    %v862 = vunpack.c.l.b16 %v262
    %v863 = vunpack.c.h.b16 %v262
    %v864 = vunpack.c.l.b16 %v263
    %v865 = vunpack.c.h.b16 %v263
    %v866 = vunpack.c.l.b16 %v264
    %v867 = vunpack.c.h.b16 %v264
    %v868 = vunpack.c.l.b16 %v265
    %v869 = vunpack.c.h.b16 %v265
    %v870 = vunpack.c.l.b16 %v266
    %v871 = vunpack.c.h.b16 %v266
    %v872 = vunpack.c.l.b16 %v267
    %v873 = vunpack.c.h.b16 %v267
    %v874 = vunpack.c.l.b16 %v268
    %v875 = vunpack.c.h.b16 %v268
    %v876 = vunpack.c.l.b16 %v269
    %v877 = vunpack.c.h.b16 %v269
    %v878 = vunpack.c.l.b16 %v270
    %v879 = vunpack.c.h.b16 %v270
    %v880 = vunpack.c.l.b16 %v271
    %v881 = vunpack.c.h.b16 %v271
    %v882 = vunpack.c.l.b16 %v272
    %v883 = vunpack.c.h.b16 %v272
    %v884 = vunpack.c.l.b16 %v273
    %v885 = vunpack.c.h.b16 %v273
    %v886 = vunpack.c.l.b16 %v274
    %v887 = vunpack.c.h.b16 %v274
    %v888 = vunpack.c.l.b16 %v275
    %v889 = vunpack.c.h.b16 %v275
    %v890 = vunpack.c.l.b16 %v276
    %v891 = vunpack.c.h.b16 %v276
    %v892 = vunpack.c.l.b16 %v277
    %v893 = vunpack.c.h.b16 %v277
    %v894 = vunpack.c.l.b16 %v278
    %v895 = vunpack.c.h.b16 %v278
    %v896 = vunpack.c.l.b16 %v279
    %v897 = vunpack.c.h.b16 %v279
    %v898 = vunpack.c.l.b16 %v280
    %v899 = vunpack.c.h.b16 %v280
    %v900 = vunpack.c.l.b16 %v281
    %v901 = vunpack.c.h.b16 %v281
    %v902 = vunpack.c.l.b16 %v282
    %v903 = vunpack.c.h.b16 %v282
    %v904 = vunpack.c.l.b16 %v283
    %v905 = vunpack.c.h.b16 %v283
    %v906 = vunpack.c.l.b16 %v284
    %v907 = vunpack.c.h.b16 %v284
    %v908 = vunpack.c.l.b16 %v285
    %v909 = vunpack.c.h.b16 %v285
    %v910 = vunpack.c.l.b16 %v286
    %v911 = vunpack.c.h.b16 %v286
    %v912 = vunpack.c.l.b16 %v287
    %v913 = vunpack.c.h.b16 %v287
    %v914 = vunpack.c.l.b16 %v288
    %v915 = vunpack.c.h.b16 %v288
    %v916 = vunpack.c.l.b16 %v289
    %v917 = vunpack.c.h.b16 %v289
    %v918 = vunpack.c.l.b16 %v290
    %v919 = vunpack.c.h.b16 %v290
    %v920 = vunpack.c.l.b16 %v291
    %v921 = vunpack.c.h.b16 %v291
    %v922 = vunpack.c.l.b16 %v292
    %v923 = vunpack.c.h.b16 %v292
    %v924 = vunpack.c.l.b16 %v293
    %v925 = vunpack.c.h.b16 %v293
    %v926 = vunpack.c.l.b16 %v294
    %v927 = vunpack.c.h.b16 %v294
    %v928 = vpack.c.b16 %v540, %v536
    %v929 = vpack.c.b16 %v541, %v537
    %v930 = vpack.c.b16 %v542, %v538
    %v931 = vpack.c.b16 %v543, %v539
    %v932 = vpack.c.b16 %v548, %v544
    %v933 = vpack.c.b16 %v549, %v545
    %v934 = vpack.c.b16 %v550, %v546
    %v935 = vpack.c.b16 %v551, %v547
    %v936 = vpack.c.b16 %v556, %v552
    %v937 = vpack.c.b16 %v557, %v553
    %v938 = vpack.c.b16 %v558, %v554
    %v939 = vpack.c.b16 %v559, %v555
    %v940 = vpack.c.b16 %v564, %v560
    %v941 = vpack.c.b16 %v565, %v561
    %v942 = vpack.c.b16 %v566, %v562
    %v943 = vpack.c.b16 %v567, %v563
    %v944 = vpack.c.b16 %v572, %v568
    %v945 = vpack.c.b16 %v573, %v569
    %v946 = vpack.c.b16 %v574, %v570
    %v947 = vpack.c.b16 %v575, %v571
    %v948 = vpack.c.b16 %v580, %v576
    %v949 = vpack.c.b16 %v581, %v577
    %v950 = vpack.c.b16 %v582, %v578
    %v951 = vpack.c.b16 %v583, %v579
    %v952 = vpack.c.b16 %v588, %v584
    %v953 = vpack.c.b16 %v589, %v585
    %v954 = vpack.c.b16 %v590, %v586
    %v955 = vpack.c.b16 %v591, %v587
    %v956 = vpack.c.b16 %v596, %v592
    %v957 = vpack.c.b16 %v597, %v593
    %v958 = vpack.c.b16 %v598, %v594
    %v959 = vpack.c.b16 %v599, %v595
    %v960 = vpack.c.b16 %v604, %v600
    %v961 = vpack.c.b16 %v605, %v601
    %v962 = vpack.c.b16 %v606, %v602
    %v963 = vpack.c.b16 %v607, %v603
    %v964 = vpack.c.b16 %v612, %v608
    %v965 = vpack.c.b16 %v613, %v609
    %v966 = vpack.c.b16 %v614, %v610
    %v967 = vpack.c.b16 %v615, %v611
    %v968 = vpack.c.b16 %v620, %v616
    %v969 = vpack.c.b16 %v621, %v617
    %v970 = vpack.c.b16 %v622, %v618
    %v971 = vpack.c.b16 %v623, %v619
    %v972 = vpack.c.b16 %v628, %v624
    %v973 = vpack.c.b16 %v629, %v625
    %v974 = vpack.c.b16 %v630, %v626
    %v975 = vpack.c.b16 %v631, %v627
    %v976 = vpack.c.b16 %v636, %v632
    %v977 = vpack.c.b16 %v637, %v633
    %v978 = vpack.c.b16 %v638, %v634
    %v979 = vpack.c.b16 %v639, %v635
    %v980 = vpack.c.b16 %v644, %v640
    %v981 = vpack.c.b16 %v645, %v641
    %v982 = vpack.c.b16 %v646, %v642
    %v983 = vpack.c.b16 %v647, %v643
    %v984 = vpack.c.b16 %v652, %v648
    %v985 = vpack.c.b16 %v653, %v649
    %v986 = vpack.c.b16 %v654, %v650
    %v987 = vpack.c.b16 %v655, %v651
    %v988 = vpack.c.b16 %v660, %v656
    %v989 = vpack.c.b16 %v661, %v657
    %v990 = vpack.c.b16 %v662, %v658
    %v991 = vpack.c.b16 %v663, %v659
    %v992 = vpack.c.b16 %v668, %v664
    %v993 = vpack.c.b16 %v669, %v665
    %v994 = vpack.c.b16 %v670, %v666
    %v995 = vpack.c.b16 %v671, %v667
    %v996 = vpack.c.b16 %v676, %v672
    %v997 = vpack.c.b16 %v677, %v673
    %v998 = vpack.c.b16 %v678, %v674
    %v999 = vpack.c.b16 %v679, %v675
    %v1000 = vpack.c.b16 %v684, %v680
    %v1001 = vpack.c.b16 %v685, %v681
    %v1002 = vpack.c.b16 %v686, %v682
    %v1003 = vpack.c.b16 %v687, %v683
    %v1004 = vpack.c.b16 %v692, %v688
    %v1005 = vpack.c.b16 %v693, %v689
    %v1006 = vpack.c.b16 %v694, %v690
    %v1007 = vpack.c.b16 %v695, %v691
    %v1008 = vpack.c.b16 %v700, %v696
    %v1009 = vpack.c.b16 %v701, %v697
    %v1010 = vpack.c.b16 %v702, %v698
    %v1011 = vpack.c.b16 %v703, %v699
    %v1012 = vpack.c.b16 %v708, %v704
    %v1013 = vpack.c.b16 %v709, %v705
    %v1014 = vpack.c.b16 %v710, %v706
    %v1015 = vpack.c.b16 %v711, %v707
    %v1016 = vpack.c.b16 %v716, %v712
    %v1017 = vpack.c.b16 %v717, %v713
    %v1018 = vpack.c.b16 %v718, %v714
    %v1019 = vpack.c.b16 %v719, %v715
    %v1020 = vpack.c.b16 %v724, %v720
    %v1021 = vpack.c.b16 %v725, %v721
    %v1022 = vpack.c.b16 %v726, %v722
    %v1023 = vpack.c.b16 %v727, %v723
    %v1024 = vpack.c.b16 %v732, %v728
    %v1025 = vpack.c.b16 %v733, %v729
    %v1026 = vpack.c.b16 %v734, %v730
    %v1027 = vpack.c.b16 %v735, %v731
    %v1028 = vpack.c.b16 %v740, %v736
    %v1029 = vpack.c.b16 %v741, %v737
    %v1030 = vpack.c.b16 %v742, %v738
    %v1031 = vpack.c.b16 %v743, %v739
    %v1032 = vpack.c.b16 %v748, %v744
    %v1033 = vpack.c.b16 %v749, %v745
    %v1034 = vpack.c.b16 %v750, %v746
    %v1035 = vpack.c.b16 %v751, %v747
    %v1036 = vpack.c.b16 %v756, %v752
    %v1037 = vpack.c.b16 %v757, %v753
    %v1038 = vpack.c.b16 %v758, %v754
    %v1039 = vpack.c.b16 %v759, %v755
    %v1040 = vpack.c.b16 %v764, %v760
    %v1041 = vpack.c.b16 %v765, %v761
    %v1042 = vpack.c.b16 %v766, %v762
    %v1043 = vpack.c.b16 %v767, %v763
    %v1044 = vpack.c.b16 %v772, %v768
    %v1045 = vpack.c.b16 %v773, %v769
    %v1046 = vpack.c.b16 %v774, %v770
    %v1047 = vpack.c.b16 %v775, %v771
    %v1048 = vpack.c.b16 %v780, %v776
    %v1049 = vpack.c.b16 %v781, %v777
    %v1050 = vpack.c.b16 %v782, %v778
    %v1051 = vpack.c.b16 %v783, %v779
    %v1052 = vpack.c.b16 %v788, %v784
    %v1053 = vpack.c.b16 %v789, %v785
    %v1054 = vpack.c.b16 %v790, %v786
    %v1055 = vpack.c.b16 %v791, %v787
    %v1056 = vpack.c.b16 %v796, %v792
    %v1057 = vpack.c.b16 %v797, %v793
    %v1058 = vpack.c.b16 %v798, %v794
    %v1059 = vpack.c.b16 %v799, %v795
    %v1060 = vpack.c.b16 %v804, %v800
    %v1061 = vpack.c.b16 %v805, %v801
    %v1062 = vpack.c.b16 %v806, %v802
    %v1063 = vpack.c.b16 %v807, %v803
    %v1064 = vpack.c.b16 %v812, %v808
    %v1065 = vpack.c.b16 %v813, %v809
    %v1066 = vpack.c.b16 %v814, %v810
    %v1067 = vpack.c.b16 %v815, %v811
    %v1068 = vpack.c.b16 %v820, %v816
    %v1069 = vpack.c.b16 %v821, %v817
    %v1070 = vpack.c.b16 %v822, %v818
    %v1071 = vpack.c.b16 %v823, %v819
    %v1072 = vpack.c.b16 %v828, %v824
    %v1073 = vpack.c.b16 %v829, %v825
    %v1074 = vpack.c.b16 %v830, %v826
    %v1075 = vpack.c.b16 %v831, %v827
    %v1076 = vpack.c.b16 %v836, %v832
    %v1077 = vpack.c.b16 %v837, %v833
    %v1078 = vpack.c.b16 %v838, %v834
    %v1079 = vpack.c.b16 %v839, %v835
    %v1080 = vpack.c.b16 %v844, %v840
    %v1081 = vpack.c.b16 %v845, %v841
    %v1082 = vpack.c.b16 %v846, %v842
    %v1083 = vpack.c.b16 %v847, %v843
    %v1084 = vpack.c.b16 %v852, %v848
    %v1085 = vpack.c.b16 %v853, %v849
    %v1086 = vpack.c.b16 %v854, %v850
    %v1087 = vpack.c.b16 %v855, %v851
    %v1088 = vpack.c.b16 %v860, %v856
    %v1089 = vpack.c.b16 %v861, %v857
    %v1090 = vpack.c.b16 %v862, %v858
    %v1091 = vpack.c.b16 %v863, %v859
    %v1092 = vpack.c.b16 %v868, %v864
    %v1093 = vpack.c.b16 %v869, %v865
    %v1094 = vpack.c.b16 %v870, %v866
    %v1095 = vpack.c.b16 %v871, %v867
    %v1096 = vpack.c.b16 %v876, %v872
    %v1097 = vpack.c.b16 %v877, %v873
    %v1098 = vpack.c.b16 %v878, %v874
    %v1099 = vpack.c.b16 %v879, %v875
    %v1100 = vpack.c.b16 %v884, %v880
    %v1101 = vpack.c.b16 %v885, %v881
    %v1102 = vpack.c.b16 %v886, %v882
    %v1103 = vpack.c.b16 %v887, %v883
    %v1104 = vpack.c.b16 %v892, %v888
    %v1105 = vpack.c.b16 %v893, %v889
    %v1106 = vpack.c.b16 %v894, %v890
    %v1107 = vpack.c.b16 %v895, %v891
    %v1108 = vpack.c.b16 %v900, %v896
    %v1109 = vpack.c.b16 %v901, %v897
    %v1110 = vpack.c.b16 %v902, %v898
    %v1111 = vpack.c.b16 %v903, %v899
    %v1112 = vpack.c.b16 %v908, %v904
    %v1113 = vpack.c.b16 %v909, %v905
    %v1114 = vpack.c.b16 %v910, %v906
    %v1115 = vpack.c.b16 %v911, %v907
    %v1116 = vpack.c.b16 %v916, %v912
    %v1117 = vpack.c.b16 %v917, %v913
    %v1118 = vpack.c.b16 %v918, %v914
    %v1119 = vpack.c.b16 %v919, %v915
    %v1120 = vpack.c.b16 %v924, %v920
    %v1121 = vpack.c.b16 %v925, %v921
    %v1122 = vpack.c.b16 %v926, %v922
    %v1123 = vpack.c.b16 %v927, %v923
    %vm1320 = vcmask 130048
    %v1322 = vsel %vm1320, %v333, 0
    %1324 = vmatpush.bf16.msra.mxu0 %v956
    %1325 = vmatpush.bf16.msra.mxu0 %v952
    %1326 = vmatpush.bf16.msra.mxu0 %v948
    %1327 = vmatpush.bf16.msra.mxu0 %v944
    %1328 = vmatpush.bf16.msra.mxu0 %v940
    %1329 = vmatpush.bf16.msra.mxu0 %v936
    %1330 = vmatpush.bf16.msra.mxu0 %v932
    %1331 = vmatpush.bf16.msra.mxu0 %v928
    %1332 = vmatmul.bf16.gmra.mxu0 %v327
    %v1333 = vpop.f32.mrf.mxu0
    %v1334 = vadd.f32 %v297, %v1333
    %v1335 = vpop.f32.mrf.mxu0
    %v1336 = vadd.f32 %v297, %v1335
    %1337 = vdwg.mxu0
    %1338 = vmatpush.bf16.msra.mxu0 %v988
    %1339 = vmatpush.bf16.msra.mxu0 %v984
    %1340 = vmatpush.bf16.msra.mxu0 %v980
    %1341 = vmatpush.bf16.msra.mxu0 %v976
    %1342 = vmatpush.bf16.msra.mxu0 %v972
    %1343 = vmatpush.bf16.msra.mxu0 %v968
    %1344 = vmatpush.bf16.msra.mxu0 %v964
    %1345 = vmatpush.bf16.msra.mxu0 %v960
    %1346 = vmatmul.bf16.gmra.mxu0 %v328
    %v1347 = vpop.f32.mrf.mxu0
    %v1348 = vadd.f32 %v1334, %v1347
    %v1349 = vpop.f32.mrf.mxu0
    %v1350 = vadd.f32 %v1336, %v1349
    %1351 = vdwg.mxu0
    %1352 = vmatpush.bf16.msra.mxu0 %v1020
    %1353 = vmatpush.bf16.msra.mxu0 %v1016
    %1354 = vmatpush.bf16.msra.mxu0 %v1012
    %1355 = vmatpush.bf16.msra.mxu0 %v1008
    %1356 = vmatpush.bf16.msra.mxu0 %v1004
    %1357 = vmatpush.bf16.msra.mxu0 %v1000
    %1358 = vmatpush.bf16.msra.mxu0 %v996
    %1359 = vmatpush.bf16.msra.mxu0 %v992
    %1360 = vmatmul.bf16.gmra.mxu0 %v329
    %v1361 = vpop.f32.mrf.mxu0
    %v1362 = vadd.f32 %v1348, %v1361
    %v1363 = vpop.f32.mrf.mxu0
    %v1364 = vadd.f32 %v1350, %v1363
    %1365 = vdwg.mxu0
    %1366 = vmatpush.bf16.msra.mxu0 %v1052
    %1367 = vmatpush.bf16.msra.mxu0 %v1048
    %1368 = vmatpush.bf16.msra.mxu0 %v1044
    %1369 = vmatpush.bf16.msra.mxu0 %v1040
    %1370 = vmatpush.bf16.msra.mxu0 %v1036
    %1371 = vmatpush.bf16.msra.mxu0 %v1032
    %1372 = vmatpush.bf16.msra.mxu0 %v1028
    %1373 = vmatpush.bf16.msra.mxu0 %v1024
    %1374 = vmatmul.bf16.gmra.mxu0 %v330
    %v1375 = vpop.f32.mrf.mxu0
    %v1376 = vadd.f32 %v1362, %v1375
    %v1377 = vpop.f32.mrf.mxu0
    %v1378 = vadd.f32 %v1364, %v1377
    %1379 = vdwg.mxu0
    %1380 = vmatpush.bf16.msra.mxu0 %v1084
    %1381 = vmatpush.bf16.msra.mxu0 %v1080
    %1382 = vmatpush.bf16.msra.mxu0 %v1076
    %1383 = vmatpush.bf16.msra.mxu0 %v1072
    %1384 = vmatpush.bf16.msra.mxu0 %v1068
    %1385 = vmatpush.bf16.msra.mxu0 %v1064
    %1386 = vmatpush.bf16.msra.mxu0 %v1060
    %1387 = vmatpush.bf16.msra.mxu0 %v1056
    %1388 = vmatmul.bf16.gmra.mxu0 %v331
    %v1389 = vpop.f32.mrf.mxu0
    %v1390 = vadd.f32 %v1376, %v1389
    %v1391 = vpop.f32.mrf.mxu0
    %v1392 = vadd.f32 %v1378, %v1391
    %1393 = vdwg.mxu0
    %1394 = vmatpush.bf16.msra.mxu0 %v1116
    %1395 = vmatpush.bf16.msra.mxu0 %v1112
    %1396 = vmatpush.bf16.msra.mxu0 %v1108
    %1397 = vmatpush.bf16.msra.mxu0 %v1104
    %1398 = vmatpush.bf16.msra.mxu0 %v1100
    %1399 = vmatpush.bf16.msra.mxu0 %v1096
    %1400 = vmatpush.bf16.msra.mxu0 %v1092
    %1401 = vmatpush.bf16.msra.mxu0 %v1088
    %1402 = vmatmul.bf16.gmra.mxu0 %v332
    %v1403 = vpop.f32.mrf.mxu0
    %v1404 = vadd.f32 %v1390, %v1403
    %v1405 = vpop.f32.mrf.mxu0
    %v1406 = vadd.f32 %v1392, %v1405
    %1407 = vdwg.mxu0
    %1408 = vmatpush.bf16.msra.mxu0 0
    %1409 = vmatpush.bf16.msra.mxu0 0
    %1410 = vmatpush.bf16.msra.mxu0 0
    %1411 = vmatpush.bf16.msra.mxu0 0
    %1412 = vmatpush.bf16.msra.mxu0 0
    %1413 = vmatpush.bf16.msra.mxu0 0
    %1414 = vmatpush.bf16.msra.mxu0 0
    %1415 = vmatpush.bf16.msra.mxu0 %v1120
    %1416 = vmatmul.bf16.gmra.mxu0 %v1322
    %v1417 = vpop.f32.mrf.mxu0
    %v1418 = vadd.f32 %v1404, %v1417
    %v1419 = vpop.f32.mrf.mxu0
    %v1420 = vadd.f32 %v1406, %v1419
    %1421 = vdwg.mxu0
    %1422 = vmatpush.bf16.msra.mxu0 %v957
    %1423 = vmatpush.bf16.msra.mxu0 %v953
    %1424 = vmatpush.bf16.msra.mxu0 %v949
    %1425 = vmatpush.bf16.msra.mxu0 %v945
    %1426 = vmatpush.bf16.msra.mxu0 %v941
    %1427 = vmatpush.bf16.msra.mxu0 %v937
    %1428 = vmatpush.bf16.msra.mxu0 %v933
    %1429 = vmatpush.bf16.msra.mxu0 %v929
    %1430 = vmatmul.bf16.gmra.mxu0 %v327
    %v1431 = vpop.f32.mrf.mxu0
    %v1432 = vadd.f32 %v298, %v1431
    %v1433 = vpop.f32.mrf.mxu0
    %v1434 = vadd.f32 %v298, %v1433
    %1435 = vdwg.mxu0
    %1436 = vmatpush.bf16.msra.mxu0 %v989
    %1437 = vmatpush.bf16.msra.mxu0 %v985
    %1438 = vmatpush.bf16.msra.mxu0 %v981
    %1439 = vmatpush.bf16.msra.mxu0 %v977
    %1440 = vmatpush.bf16.msra.mxu0 %v973
    %1441 = vmatpush.bf16.msra.mxu0 %v969
    %1442 = vmatpush.bf16.msra.mxu0 %v965
    %1443 = vmatpush.bf16.msra.mxu0 %v961
    %1444 = vmatmul.bf16.gmra.mxu0 %v328
    %v1445 = vpop.f32.mrf.mxu0
    %v1446 = vadd.f32 %v1432, %v1445
    %v1447 = vpop.f32.mrf.mxu0
    %v1448 = vadd.f32 %v1434, %v1447
    %1449 = vdwg.mxu0
    %1450 = vmatpush.bf16.msra.mxu0 %v1021
    %1451 = vmatpush.bf16.msra.mxu0 %v1017
    %1452 = vmatpush.bf16.msra.mxu0 %v1013
    %1453 = vmatpush.bf16.msra.mxu0 %v1009
    %1454 = vmatpush.bf16.msra.mxu0 %v1005
    %1455 = vmatpush.bf16.msra.mxu0 %v1001
    %1456 = vmatpush.bf16.msra.mxu0 %v997
    %1457 = vmatpush.bf16.msra.mxu0 %v993
    %1458 = vmatmul.bf16.gmra.mxu0 %v329
    %v1459 = vpop.f32.mrf.mxu0
    %v1460 = vadd.f32 %v1446, %v1459
    %v1461 = vpop.f32.mrf.mxu0
    %v1462 = vadd.f32 %v1448, %v1461
    %1463 = vdwg.mxu0
    %1464 = vmatpush.bf16.msra.mxu0 %v1053
    %1465 = vmatpush.bf16.msra.mxu0 %v1049
    %1466 = vmatpush.bf16.msra.mxu0 %v1045
    %1467 = vmatpush.bf16.msra.mxu0 %v1041
    %1468 = vmatpush.bf16.msra.mxu0 %v1037
    %1469 = vmatpush.bf16.msra.mxu0 %v1033
    %1470 = vmatpush.bf16.msra.mxu0 %v1029
    %1471 = vmatpush.bf16.msra.mxu0 %v1025
    %1472 = vmatmul.bf16.gmra.mxu0 %v330
    %v1473 = vpop.f32.mrf.mxu0
    %v1474 = vadd.f32 %v1460, %v1473
    %v1475 = vpop.f32.mrf.mxu0
    %v1476 = vadd.f32 %v1462, %v1475
    %1477 = vdwg.mxu0
    %1478 = vmatpush.bf16.msra.mxu0 %v1085
    %1479 = vmatpush.bf16.msra.mxu0 %v1081
    %1480 = vmatpush.bf16.msra.mxu0 %v1077
    %1481 = vmatpush.bf16.msra.mxu0 %v1073
    %1482 = vmatpush.bf16.msra.mxu0 %v1069
    %1483 = vmatpush.bf16.msra.mxu0 %v1065
    %1484 = vmatpush.bf16.msra.mxu0 %v1061
    %1485 = vmatpush.bf16.msra.mxu0 %v1057
    %1486 = vmatmul.bf16.gmra.mxu0 %v331
    %v1487 = vpop.f32.mrf.mxu0
    %v1488 = vadd.f32 %v1474, %v1487
    %v1489 = vpop.f32.mrf.mxu0
    %v1490 = vadd.f32 %v1476, %v1489
    %1491 = vdwg.mxu0
    %1492 = vmatpush.bf16.msra.mxu0 %v1117
    %1493 = vmatpush.bf16.msra.mxu0 %v1113
    %1494 = vmatpush.bf16.msra.mxu0 %v1109
    %1495 = vmatpush.bf16.msra.mxu0 %v1105
    %1496 = vmatpush.bf16.msra.mxu0 %v1101
    %1497 = vmatpush.bf16.msra.mxu0 %v1097
    %1498 = vmatpush.bf16.msra.mxu0 %v1093
    %1499 = vmatpush.bf16.msra.mxu0 %v1089
    %1500 = vmatmul.bf16.gmra.mxu0 %v332
    %v1501 = vpop.f32.mrf.mxu0
    %v1502 = vadd.f32 %v1488, %v1501
    %v1503 = vpop.f32.mrf.mxu0
    %v1504 = vadd.f32 %v1490, %v1503
    %1505 = vdwg.mxu0
    %1506 = vmatpush.bf16.msra.mxu0 0
    %1507 = vmatpush.bf16.msra.mxu0 0
    %1508 = vmatpush.bf16.msra.mxu0 0
    %1509 = vmatpush.bf16.msra.mxu0 0
    %1510 = vmatpush.bf16.msra.mxu0 0
    %1511 = vmatpush.bf16.msra.mxu0 0
    %1512 = vmatpush.bf16.msra.mxu0 0
    %1513 = vmatpush.bf16.msra.mxu0 %v1121
    %1514 = vmatmul.bf16.gmra.mxu0 %v1322
    %v1515 = vpop.f32.mrf.mxu0
    %v1516 = vadd.f32 %v1502, %v1515
    %v1517 = vpop.f32.mrf.mxu0
    %v1518 = vadd.f32 %v1504, %v1517
    %1519 = vdwg.mxu0
    %1520 = vmatpush.bf16.msra.mxu0 %v958
    %1521 = vmatpush.bf16.msra.mxu0 %v954
    %1522 = vmatpush.bf16.msra.mxu0 %v950
    %1523 = vmatpush.bf16.msra.mxu0 %v946
    %1524 = vmatpush.bf16.msra.mxu0 %v942
    %1525 = vmatpush.bf16.msra.mxu0 %v938
    %1526 = vmatpush.bf16.msra.mxu0 %v934
    %1527 = vmatpush.bf16.msra.mxu0 %v930
    %1528 = vmatmul.bf16.gmra.mxu0 %v327
    %v1529 = vpop.f32.mrf.mxu0
    %v1530 = vadd.f32 %v299, %v1529
    %v1531 = vpop.f32.mrf.mxu0
    %v1532 = vadd.f32 %v299, %v1531
    %1533 = vdwg.mxu0
    %1534 = vmatpush.bf16.msra.mxu0 %v990
    %1535 = vmatpush.bf16.msra.mxu0 %v986
    %1536 = vmatpush.bf16.msra.mxu0 %v982
    %1537 = vmatpush.bf16.msra.mxu0 %v978
    %1538 = vmatpush.bf16.msra.mxu0 %v974
    %1539 = vmatpush.bf16.msra.mxu0 %v970
    %1540 = vmatpush.bf16.msra.mxu0 %v966
    %1541 = vmatpush.bf16.msra.mxu0 %v962
    %1542 = vmatmul.bf16.gmra.mxu0 %v328
    %v1543 = vpop.f32.mrf.mxu0
    %v1544 = vadd.f32 %v1530, %v1543
    %v1545 = vpop.f32.mrf.mxu0
    %v1546 = vadd.f32 %v1532, %v1545
    %1547 = vdwg.mxu0
    %1548 = vmatpush.bf16.msra.mxu0 %v1022
    %1549 = vmatpush.bf16.msra.mxu0 %v1018
    %1550 = vmatpush.bf16.msra.mxu0 %v1014
    %1551 = vmatpush.bf16.msra.mxu0 %v1010
    %1552 = vmatpush.bf16.msra.mxu0 %v1006
    %1553 = vmatpush.bf16.msra.mxu0 %v1002
    %1554 = vmatpush.bf16.msra.mxu0 %v998
    %1555 = vmatpush.bf16.msra.mxu0 %v994
    %1556 = vmatmul.bf16.gmra.mxu0 %v329
    %v1557 = vpop.f32.mrf.mxu0
    %v1558 = vadd.f32 %v1544, %v1557
    %v1559 = vpop.f32.mrf.mxu0
    %v1560 = vadd.f32 %v1546, %v1559
    %1561 = vdwg.mxu0
    %1562 = vmatpush.bf16.msra.mxu0 %v1054
    %1563 = vmatpush.bf16.msra.mxu0 %v1050
    %1564 = vmatpush.bf16.msra.mxu0 %v1046
    %1565 = vmatpush.bf16.msra.mxu0 %v1042
    %1566 = vmatpush.bf16.msra.mxu0 %v1038
    %1567 = vmatpush.bf16.msra.mxu0 %v1034
    %1568 = vmatpush.bf16.msra.mxu0 %v1030
    %1569 = vmatpush.bf16.msra.mxu0 %v1026
    %1570 = vmatmul.bf16.gmra.mxu0 %v330
    %v1571 = vpop.f32.mrf.mxu0
    %v1572 = vadd.f32 %v1558, %v1571
    %v1573 = vpop.f32.mrf.mxu0
    %v1574 = vadd.f32 %v1560, %v1573
    %1575 = vdwg.mxu0
    %1576 = vmatpush.bf16.msra.mxu0 %v1086
    %1577 = vmatpush.bf16.msra.mxu0 %v1082
    %1578 = vmatpush.bf16.msra.mxu0 %v1078
    %1579 = vmatpush.bf16.msra.mxu0 %v1074
    %1580 = vmatpush.bf16.msra.mxu0 %v1070
    %1581 = vmatpush.bf16.msra.mxu0 %v1066
    %1582 = vmatpush.bf16.msra.mxu0 %v1062
    %1583 = vmatpush.bf16.msra.mxu0 %v1058
    %1584 = vmatmul.bf16.gmra.mxu0 %v331
    %v1585 = vpop.f32.mrf.mxu0
    %v1586 = vadd.f32 %v1572, %v1585
    %v1587 = vpop.f32.mrf.mxu0
    %v1588 = vadd.f32 %v1574, %v1587
    %1589 = vdwg.mxu0
    %1590 = vmatpush.bf16.msra.mxu0 %v1118
    %1591 = vmatpush.bf16.msra.mxu0 %v1114
    %1592 = vmatpush.bf16.msra.mxu0 %v1110
    %1593 = vmatpush.bf16.msra.mxu0 %v1106
    %1594 = vmatpush.bf16.msra.mxu0 %v1102
    %1595 = vmatpush.bf16.msra.mxu0 %v1098
    %1596 = vmatpush.bf16.msra.mxu0 %v1094
    %1597 = vmatpush.bf16.msra.mxu0 %v1090
    %1598 = vmatmul.bf16.gmra.mxu0 %v332
    %v1599 = vpop.f32.mrf.mxu0
    %v1600 = vadd.f32 %v1586, %v1599
    %v1601 = vpop.f32.mrf.mxu0
    %v1602 = vadd.f32 %v1588, %v1601
    %1603 = vdwg.mxu0
    %1604 = vmatpush.bf16.msra.mxu0 0
    %1605 = vmatpush.bf16.msra.mxu0 0
    %1606 = vmatpush.bf16.msra.mxu0 0
    %1607 = vmatpush.bf16.msra.mxu0 0
    %1608 = vmatpush.bf16.msra.mxu0 0
    %1609 = vmatpush.bf16.msra.mxu0 0
    %1610 = vmatpush.bf16.msra.mxu0 0
    %1611 = vmatpush.bf16.msra.mxu0 %v1122
    %1612 = vmatmul.bf16.gmra.mxu0 %v1322
    %v1613 = vpop.f32.mrf.mxu0
    %v1614 = vadd.f32 %v1600, %v1613
    %v1615 = vpop.f32.mrf.mxu0
    %v1616 = vadd.f32 %v1602, %v1615
    %1617 = vdwg.mxu0
    %1618 = vmatpush.bf16.msra.mxu0 %v959
    %1619 = vmatpush.bf16.msra.mxu0 %v955
    %1620 = vmatpush.bf16.msra.mxu0 %v951
    %1621 = vmatpush.bf16.msra.mxu0 %v947
    %1622 = vmatpush.bf16.msra.mxu0 %v943
    %1623 = vmatpush.bf16.msra.mxu0 %v939
    %1624 = vmatpush.bf16.msra.mxu0 %v935
    %1625 = vmatpush.bf16.msra.mxu0 %v931
    %1626 = vmatmul.bf16.gmra.mxu0 %v327
    %v1627 = vpop.f32.mrf.mxu0
    %v1628 = vadd.f32 %v300, %v1627
    %v1629 = vpop.f32.mrf.mxu0
    %v1630 = vadd.f32 %v300, %v1629
    %1631 = vdwg.mxu0
    %1632 = vmatpush.bf16.msra.mxu0 %v991
    %1633 = vmatpush.bf16.msra.mxu0 %v987
    %1634 = vmatpush.bf16.msra.mxu0 %v983
    %1635 = vmatpush.bf16.msra.mxu0 %v979
    %1636 = vmatpush.bf16.msra.mxu0 %v975
    %1637 = vmatpush.bf16.msra.mxu0 %v971
    %1638 = vmatpush.bf16.msra.mxu0 %v967
    %1639 = vmatpush.bf16.msra.mxu0 %v963
    %1640 = vmatmul.bf16.gmra.mxu0 %v328
    %v1641 = vpop.f32.mrf.mxu0
    %v1642 = vadd.f32 %v1628, %v1641
    %v1643 = vpop.f32.mrf.mxu0
    %v1644 = vadd.f32 %v1630, %v1643
    %1645 = vdwg.mxu0
    %1646 = vmatpush.bf16.msra.mxu0 %v1023
    %1647 = vmatpush.bf16.msra.mxu0 %v1019
    %1648 = vmatpush.bf16.msra.mxu0 %v1015
    %1649 = vmatpush.bf16.msra.mxu0 %v1011
    %1650 = vmatpush.bf16.msra.mxu0 %v1007
    %1651 = vmatpush.bf16.msra.mxu0 %v1003
    %1652 = vmatpush.bf16.msra.mxu0 %v999
    %1653 = vmatpush.bf16.msra.mxu0 %v995
    %1654 = vmatmul.bf16.gmra.mxu0 %v329
    %v1655 = vpop.f32.mrf.mxu0
    %v1656 = vadd.f32 %v1642, %v1655
    %v1657 = vpop.f32.mrf.mxu0
    %v1658 = vadd.f32 %v1644, %v1657
    %1659 = vdwg.mxu0
    %1660 = vmatpush.bf16.msra.mxu0 %v1055
    %1661 = vmatpush.bf16.msra.mxu0 %v1051
    %1662 = vmatpush.bf16.msra.mxu0 %v1047
    %1663 = vmatpush.bf16.msra.mxu0 %v1043
    %1664 = vmatpush.bf16.msra.mxu0 %v1039
    %1665 = vmatpush.bf16.msra.mxu0 %v1035
    %1666 = vmatpush.bf16.msra.mxu0 %v1031
    %1667 = vmatpush.bf16.msra.mxu0 %v1027
    %1668 = vmatmul.bf16.gmra.mxu0 %v330
    %v1669 = vpop.f32.mrf.mxu0
    %v1670 = vadd.f32 %v1656, %v1669
    %v1671 = vpop.f32.mrf.mxu0
    %v1672 = vadd.f32 %v1658, %v1671
    %1673 = vdwg.mxu0
    %1674 = vmatpush.bf16.msra.mxu0 %v1087
    %1675 = vmatpush.bf16.msra.mxu0 %v1083
    %1676 = vmatpush.bf16.msra.mxu0 %v1079
    %1677 = vmatpush.bf16.msra.mxu0 %v1075
    %1678 = vmatpush.bf16.msra.mxu0 %v1071
    %1679 = vmatpush.bf16.msra.mxu0 %v1067
    %1680 = vmatpush.bf16.msra.mxu0 %v1063
    %1681 = vmatpush.bf16.msra.mxu0 %v1059
    %1682 = vmatmul.bf16.gmra.mxu0 %v331
    %v1683 = vpop.f32.mrf.mxu0
    %v1684 = vadd.f32 %v1670, %v1683
    %v1685 = vpop.f32.mrf.mxu0
    %v1686 = vadd.f32 %v1672, %v1685
    %1687 = vdwg.mxu0
    %1688 = vmatpush.bf16.msra.mxu0 %v1119
    %1689 = vmatpush.bf16.msra.mxu0 %v1115
    %1690 = vmatpush.bf16.msra.mxu0 %v1111
    %1691 = vmatpush.bf16.msra.mxu0 %v1107
    %1692 = vmatpush.bf16.msra.mxu0 %v1103
    %1693 = vmatpush.bf16.msra.mxu0 %v1099
    %1694 = vmatpush.bf16.msra.mxu0 %v1095
    %1695 = vmatpush.bf16.msra.mxu0 %v1091
    %1696 = vmatmul.bf16.gmra.mxu0 %v332
    %v1697 = vpop.f32.mrf.mxu0
    %v1698 = vadd.f32 %v1684, %v1697
    %v1699 = vpop.f32.mrf.mxu0
    %v1700 = vadd.f32 %v1686, %v1699
    %1701 = vdwg.mxu0
    %1702 = vmatpush.bf16.msra.mxu0 0
    %1703 = vmatpush.bf16.msra.mxu0 0
    %1704 = vmatpush.bf16.msra.mxu0 0
    %1705 = vmatpush.bf16.msra.mxu0 0
    %1706 = vmatpush.bf16.msra.mxu0 0
    %1707 = vmatpush.bf16.msra.mxu0 0
    %1708 = vmatpush.bf16.msra.mxu0 0
    %1709 = vmatpush.bf16.msra.mxu0 %v1123
    %1710 = vmatmul.bf16.gmra.mxu0 %v1322
    %v1711 = vpop.f32.mrf.mxu0
    %v1712 = vadd.f32 %v1698, %v1711
    %v1713 = vpop.f32.mrf.mxu0
    %v1714 = vadd.f32 %v1700, %v1713
    %1715 = vdwg.mxu0
    %vm1716 = vcmp.gt.f32.partialorder %v1418, 0.0
    %vm1717 = vcmp.gt.f32.partialorder %v1516, 0.0
    %vm1718 = vcmp.gt.f32.partialorder %v1614, 0.0
    %vm1719 = vcmp.gt.f32.partialorder %v1712, 0.0
    %vm1720 = vcmp.gt.f32.partialorder %v1420, 0.0
    %vm1721 = vcmp.gt.f32.partialorder %v1518, 0.0
    %vm1722 = vcmp.gt.f32.partialorder %v1616, 0.0
    %vm1723 = vcmp.gt.f32.partialorder %v1714, 0.0
    %v1724 = vmul.f32 %v1418, 0.2
    %v1725 = vmul.f32 %v1516, 0.2
    %v1726 = vmul.f32 %v1614, 0.2
    %v1727 = vmul.f32 %v1712, 0.2
    %v1728 = vmul.f32 %v1420, 0.2
    %v1729 = vmul.f32 %v1518, 0.2
    %v1730 = vmul.f32 %v1616, 0.2
    %v1731 = vmul.f32 %v1714, 0.2
    %v1732 = vsel %vm1716, %v1418, %v1724
    %v1733 = vsel %vm1717, %v1516, %v1725
    %v1734 = vsel %vm1718, %v1614, %v1726
    %v1735 = vsel %vm1719, %v1712, %v1727
    %v1736 = vsel %vm1720, %v1420, %v1728
    %v1737 = vsel %vm1721, %v1518, %v1729
    %v1738 = vsel %vm1722, %v1616, %v1730
    %v1739 = vsel %vm1723, %v1714, %v1731
    %v1740 = vpack.c.bf16 %v1736, %v1732
    %v1741 = vpack.c.bf16 %v1737, %v1733
    %v1742 = vpack.c.bf16 %v1738, %v1734
    %v1743 = vpack.c.bf16 %v1739, %v1735
    %v1744 = vld [vmem:[#allocation9] sm:$0xff]
    %v1745 = vld [vmem:[#allocation9 + $0x8] sm:$0xff]
    %v1746 = vld [vmem:[#allocation9 + $0x10] sm:$0xff]
    %v1747 = vld [vmem:[#allocation9 + $0x18] sm:$0xff]
    %v1748 = vld [vmem:[#allocation9 + $0x20] sm:$0xff]
    %v1749 = vld [vmem:[#allocation9 + $0x28] sm:$0xff]
    %v1750 = vld [vmem:[#allocation9 + $0x30] sm:$0xff]
    %v1751 = vld [vmem:[#allocation9 + $0x38] sm:$0xff]
    %v1752 = vld [vmem:[#allocation9 + $0x40] sm:$0xff]
    %v1753 = vld [vmem:[#allocation9 + $0x48] sm:$0xff]
    %v1754 = vld [vmem:[#allocation9 + $0x50] sm:$0xff]
    %v1755 = vld [vmem:[#allocation9 + $0x58] sm:$0xff]
    %v1756 = vld [vmem:[#allocation9 + $0x60] sm:$0xff]
    %v1757 = vld [vmem:[#allocation9 + $0x68] sm:$0xff]
    %v1758 = vld [vmem:[#allocation9 + $0x70] sm:$0xff]
    %v1759 = vld [vmem:[#allocation9 + $0x78] sm:$0xff]
    %v1760 = vld [vmem:[#allocation9 + $0x80] sm:$0xff]
    %v1761 = vld [vmem:[#allocation9 + $0x88] sm:$0xff]
    %v1762 = vld [vmem:[#allocation9 + $0x90] sm:$0xff]
    %v1763 = vld [vmem:[#allocation9 + $0x98] sm:$0xff]
    %v1764 = vld [vmem:[#allocation9 + $0xa0] sm:$0xff]
    %v1765 = vld [vmem:[#allocation9 + $0xa8] sm:$0xff]
    %v1766 = vld [vmem:[#allocation9 + $0xb0] sm:$0xff]
    %v1767 = vld [vmem:[#allocation9 + $0xb8] sm:$0xff]
    %v1768 = vld [vmem:[#allocation9 + $0xc0] sm:$0xff]
    %v1769 = vld [vmem:[#allocation9 + $0xc8] sm:$0xff]
    %v1770 = vld [vmem:[#allocation9 + $0xd0] sm:$0xff]
    %v1771 = vld [vmem:[#allocation9 + $0xd8] sm:$0xff]
    %v1772 = vld [vmem:[#allocation9 + $0xe0] sm:$0xff]
    %v1773 = vld [vmem:[#allocation9 + $0xe8] sm:$0xff]
    %v1774 = vld [vmem:[#allocation9 + $0xf0] sm:$0xff]
    %v1775 = vld [vmem:[#allocation9 + $0xf8] sm:$0xff]
    %v1776 = vld [vmem:[#allocation9 + $0x100] sm:$0xff]
    %v1777 = vld [vmem:[#allocation9 + $0x108] sm:$0xff]
    %v1778 = vld [vmem:[#allocation9 + $0x110] sm:$0xff]
    %v1779 = vld [vmem:[#allocation9 + $0x118] sm:$0xff]
    %v1780 = vld [vmem:[#allocation9 + $0x120] sm:$0xff]
    %v1781 = vld [vmem:[#allocation9 + $0x128] sm:$0xff]
    %v1782 = vld [vmem:[#allocation9 + $0x130] sm:$0xff]
    %v1783 = vld [vmem:[#allocation9 + $0x138] sm:$0xff]
    %v1784 = vld [vmem:[#allocation9 + $0x140] sm:$0xff]
    %v1785 = vld [vmem:[#allocation9 + $0x148] sm:$0xff]
    %v1786 = vld [vmem:[#allocation9 + $0x150] sm:$0xff]
    %v1787 = vld [vmem:[#allocation9 + $0x158] sm:$0xff]
    %v1788 = vld [vmem:[#allocation9 + $0x160] sm:$0xff]
    %v1789 = vld [vmem:[#allocation9 + $0x168] sm:$0xff]
    %v1790 = vld [vmem:[#allocation9 + $0x170] sm:$0xff]
    %v1791 = vld [vmem:[#allocation9 + $0x178] sm:$0xff]
    %v1792 = vld [vmem:[#allocation9 + $0x180] sm:$0xff]
    %v1793 = vld [vmem:[#allocation9 + $0x188] sm:$0xff]
    %v1794 = vld [vmem:[#allocation9 + $0x190] sm:$0xff]
    %v1795 = vld [vmem:[#allocation9 + $0x198] sm:$0xff]
    %v1796 = vld [vmem:[#allocation9 + $0x1a0] sm:$0xff]
    %v1797 = vld [vmem:[#allocation9 + $0x1a8] sm:$0xff]
    %v1798 = vld [vmem:[#allocation9 + $0x1b0] sm:$0xff]
    %v1799 = vld [vmem:[#allocation9 + $0x1b8] sm:$0xff]
    %v1800 = vld [vmem:[#allocation9 + $0x1c0] sm:$0xff]
    %v1801 = vld [vmem:[#allocation9 + $0x1c8] sm:$0xff]
    %v1802 = vld [vmem:[#allocation9 + $0x1d0] sm:$0xff]
    %v1803 = vld [vmem:[#allocation9 + $0x1d8] sm:$0xff]
    %v1804 = vld [vmem:[#allocation9 + $0x1e0] sm:$0xff]
    %v1805 = vld [vmem:[#allocation9 + $0x1e8] sm:$0xff]
    %v1806 = vld [vmem:[#allocation9 + $0x1f0] sm:$0xff]
    %v1807 = vld [vmem:[#allocation9 + $0x1f8] sm:$0xff]
    %v1808 = vld [vmem:[%s4] sm:$0x3]
    %v1810 = vperm.slane %v1808, 0
    %v1811 = vperm.slane %v1808, 1
    %v1878 = vunpack.c.l.b16 %v1744
    %v1879 = vunpack.c.h.b16 %v1744
    %v1880 = vunpack.c.l.b16 %v1745
    %v1881 = vunpack.c.h.b16 %v1745
    %v1882 = vunpack.c.l.b16 %v1746
    %v1883 = vunpack.c.h.b16 %v1746
    %v1884 = vunpack.c.l.b16 %v1747
    %v1885 = vunpack.c.h.b16 %v1747
    %v1886 = vunpack.c.l.b16 %v1748
    %v1887 = vunpack.c.h.b16 %v1748
    %v1888 = vunpack.c.l.b16 %v1749
    %v1889 = vunpack.c.h.b16 %v1749
    %v1890 = vunpack.c.l.b16 %v1750
    %v1891 = vunpack.c.h.b16 %v1750
    %v1892 = vunpack.c.l.b16 %v1751
    %v1893 = vunpack.c.h.b16 %v1751
    %v1894 = vunpack.c.l.b16 %v1752
    %v1895 = vunpack.c.h.b16 %v1752
    %v1896 = vunpack.c.l.b16 %v1753
    %v1897 = vunpack.c.h.b16 %v1753
    %v1898 = vunpack.c.l.b16 %v1754
    %v1899 = vunpack.c.h.b16 %v1754
    %v1900 = vunpack.c.l.b16 %v1755
    %v1901 = vunpack.c.h.b16 %v1755
    %v1902 = vunpack.c.l.b16 %v1756
    %v1903 = vunpack.c.h.b16 %v1756
    %v1904 = vunpack.c.l.b16 %v1757
    %v1905 = vunpack.c.h.b16 %v1757
    %v1906 = vunpack.c.l.b16 %v1758
    %v1907 = vunpack.c.h.b16 %v1758
    %v1908 = vunpack.c.l.b16 %v1759
    %v1909 = vunpack.c.h.b16 %v1759
    %v1910 = vunpack.c.l.b16 %v1760
    %v1911 = vunpack.c.h.b16 %v1760
    %v1912 = vunpack.c.l.b16 %v1761
    %v1913 = vunpack.c.h.b16 %v1761
    %v1914 = vunpack.c.l.b16 %v1762
    %v1915 = vunpack.c.h.b16 %v1762
    %v1916 = vunpack.c.l.b16 %v1763
    %v1917 = vunpack.c.h.b16 %v1763
    %v1918 = vunpack.c.l.b16 %v1764
    %v1919 = vunpack.c.h.b16 %v1764
    %v1920 = vunpack.c.l.b16 %v1765
    %v1921 = vunpack.c.h.b16 %v1765
    %v1922 = vunpack.c.l.b16 %v1766
    %v1923 = vunpack.c.h.b16 %v1766
    %v1924 = vunpack.c.l.b16 %v1767
    %v1925 = vunpack.c.h.b16 %v1767
    %v1926 = vunpack.c.l.b16 %v1768
    %v1927 = vunpack.c.h.b16 %v1768
    %v1928 = vunpack.c.l.b16 %v1769
    %v1929 = vunpack.c.h.b16 %v1769
    %v1930 = vunpack.c.l.b16 %v1770
    %v1931 = vunpack.c.h.b16 %v1770
    %v1932 = vunpack.c.l.b16 %v1771
    %v1933 = vunpack.c.h.b16 %v1771
    %v1934 = vunpack.c.l.b16 %v1772
    %v1935 = vunpack.c.h.b16 %v1772
    %v1936 = vunpack.c.l.b16 %v1773
    %v1937 = vunpack.c.h.b16 %v1773
    %v1938 = vunpack.c.l.b16 %v1774
    %v1939 = vunpack.c.h.b16 %v1774
    %v1940 = vunpack.c.l.b16 %v1775
    %v1941 = vunpack.c.h.b16 %v1775
    %v1942 = vunpack.c.l.b16 %v1776
    %v1943 = vunpack.c.h.b16 %v1776
    %v1944 = vunpack.c.l.b16 %v1777
    %v1945 = vunpack.c.h.b16 %v1777
    %v1946 = vunpack.c.l.b16 %v1778
    %v1947 = vunpack.c.h.b16 %v1778
    %v1948 = vunpack.c.l.b16 %v1779
    %v1949 = vunpack.c.h.b16 %v1779
    %v1950 = vunpack.c.l.b16 %v1780
    %v1951 = vunpack.c.h.b16 %v1780
    %v1952 = vunpack.c.l.b16 %v1781
    %v1953 = vunpack.c.h.b16 %v1781
    %v1954 = vunpack.c.l.b16 %v1782
    %v1955 = vunpack.c.h.b16 %v1782
    %v1956 = vunpack.c.l.b16 %v1783
    %v1957 = vunpack.c.h.b16 %v1783
    %v1958 = vunpack.c.l.b16 %v1784
    %v1959 = vunpack.c.h.b16 %v1784
    %v1960 = vunpack.c.l.b16 %v1785
    %v1961 = vunpack.c.h.b16 %v1785
    %v1962 = vunpack.c.l.b16 %v1786
    %v1963 = vunpack.c.h.b16 %v1786
    %v1964 = vunpack.c.l.b16 %v1787
    %v1965 = vunpack.c.h.b16 %v1787
    %v1966 = vunpack.c.l.b16 %v1788
    %v1967 = vunpack.c.h.b16 %v1788
    %v1968 = vunpack.c.l.b16 %v1789
    %v1969 = vunpack.c.h.b16 %v1789
    %v1970 = vunpack.c.l.b16 %v1790
    %v1971 = vunpack.c.h.b16 %v1790
    %v1972 = vunpack.c.l.b16 %v1791
    %v1973 = vunpack.c.h.b16 %v1791
    %v1974 = vunpack.c.l.b16 %v1792
    %v1975 = vunpack.c.h.b16 %v1792
    %v1976 = vunpack.c.l.b16 %v1793
    %v1977 = vunpack.c.h.b16 %v1793
    %v1978 = vunpack.c.l.b16 %v1794
    %v1979 = vunpack.c.h.b16 %v1794
    %v1980 = vunpack.c.l.b16 %v1795
    %v1981 = vunpack.c.h.b16 %v1795
    %v1982 = vunpack.c.l.b16 %v1796
    %v1983 = vunpack.c.h.b16 %v1796
    %v1984 = vunpack.c.l.b16 %v1797
    %v1985 = vunpack.c.h.b16 %v1797
    %v1986 = vunpack.c.l.b16 %v1798
    %v1987 = vunpack.c.h.b16 %v1798
    %v1988 = vunpack.c.l.b16 %v1799
    %v1989 = vunpack.c.h.b16 %v1799
    %v1990 = vunpack.c.l.b16 %v1800
    %v1991 = vunpack.c.h.b16 %v1800
    %v1992 = vunpack.c.l.b16 %v1801
    %v1993 = vunpack.c.h.b16 %v1801
    %v1994 = vunpack.c.l.b16 %v1802
    %v1995 = vunpack.c.h.b16 %v1802
    %v1996 = vunpack.c.l.b16 %v1803
    %v1997 = vunpack.c.h.b16 %v1803
    %v1998 = vunpack.c.l.b16 %v1804
    %v1999 = vunpack.c.h.b16 %v1804
    %v2000 = vunpack.c.l.b16 %v1805
    %v2001 = vunpack.c.h.b16 %v1805
    %v2002 = vunpack.c.l.b16 %v1806
    %v2003 = vunpack.c.h.b16 %v1806
    %v2004 = vunpack.c.l.b16 %v1807
    %v2005 = vunpack.c.h.b16 %v1807
    %v2006 = vpack.c.b16 %v1880, %v1878
    %v2007 = vpack.c.b16 %v1881, %v1879
    %v2008 = vpack.c.b16 %v1884, %v1882
    %v2009 = vpack.c.b16 %v1885, %v1883
    %v2010 = vpack.c.b16 %v1888, %v1886
    %v2011 = vpack.c.b16 %v1889, %v1887
    %v2012 = vpack.c.b16 %v1892, %v1890
    %v2013 = vpack.c.b16 %v1893, %v1891
    %v2014 = vpack.c.b16 %v1896, %v1894
    %v2015 = vpack.c.b16 %v1897, %v1895
    %v2016 = vpack.c.b16 %v1900, %v1898
    %v2017 = vpack.c.b16 %v1901, %v1899
    %v2018 = vpack.c.b16 %v1904, %v1902
    %v2019 = vpack.c.b16 %v1905, %v1903
    %v2020 = vpack.c.b16 %v1908, %v1906
    %v2021 = vpack.c.b16 %v1909, %v1907
    %v2022 = vpack.c.b16 %v1912, %v1910
    %v2023 = vpack.c.b16 %v1913, %v1911
    %v2024 = vpack.c.b16 %v1916, %v1914
    %v2025 = vpack.c.b16 %v1917, %v1915
    %v2026 = vpack.c.b16 %v1920, %v1918
    %v2027 = vpack.c.b16 %v1921, %v1919
    %v2028 = vpack.c.b16 %v1924, %v1922
    %v2029 = vpack.c.b16 %v1925, %v1923
    %v2030 = vpack.c.b16 %v1928, %v1926
    %v2031 = vpack.c.b16 %v1929, %v1927
    %v2032 = vpack.c.b16 %v1932, %v1930
    %v2033 = vpack.c.b16 %v1933, %v1931
    %v2034 = vpack.c.b16 %v1936, %v1934
    %v2035 = vpack.c.b16 %v1937, %v1935
    %v2036 = vpack.c.b16 %v1940, %v1938
    %v2037 = vpack.c.b16 %v1941, %v1939
    %v2038 = vpack.c.b16 %v1944, %v1942
    %v2039 = vpack.c.b16 %v1945, %v1943
    %v2040 = vpack.c.b16 %v1948, %v1946
    %v2041 = vpack.c.b16 %v1949, %v1947
    %v2042 = vpack.c.b16 %v1952, %v1950
    %v2043 = vpack.c.b16 %v1953, %v1951
    %v2044 = vpack.c.b16 %v1956, %v1954
    %v2045 = vpack.c.b16 %v1957, %v1955
    %v2046 = vpack.c.b16 %v1960, %v1958
    %v2047 = vpack.c.b16 %v1961, %v1959
    %v2048 = vpack.c.b16 %v1964, %v1962
    %v2049 = vpack.c.b16 %v1965, %v1963
    %v2050 = vpack.c.b16 %v1968, %v1966
    %v2051 = vpack.c.b16 %v1969, %v1967
    %v2052 = vpack.c.b16 %v1972, %v1970
    %v2053 = vpack.c.b16 %v1973, %v1971
    %v2054 = vpack.c.b16 %v1976, %v1974
    %v2055 = vpack.c.b16 %v1977, %v1975
    %v2056 = vpack.c.b16 %v1980, %v1978
    %v2057 = vpack.c.b16 %v1981, %v1979
    %v2058 = vpack.c.b16 %v1984, %v1982
    %v2059 = vpack.c.b16 %v1985, %v1983
    %v2060 = vpack.c.b16 %v1988, %v1986
    %v2061 = vpack.c.b16 %v1989, %v1987
    %v2062 = vpack.c.b16 %v1992, %v1990
    %v2063 = vpack.c.b16 %v1993, %v1991
    %v2064 = vpack.c.b16 %v1996, %v1994
    %v2065 = vpack.c.b16 %v1997, %v1995
    %v2066 = vpack.c.b16 %v2000, %v1998
    %v2067 = vpack.c.b16 %v2001, %v1999
    %v2068 = vpack.c.b16 %v2004, %v2002
    %v2069 = vpack.c.b16 %v2005, %v2003
    %2134 = vmatpush.bf16.msra.mxu0 %v2020
    %2135 = vmatpush.bf16.msra.mxu0 %v2018
    %2136 = vmatpush.bf16.msra.mxu0 %v2016
    %2137 = vmatpush.bf16.msra.mxu0 %v2014
    %2138 = vmatpush.bf16.msra.mxu0 %v2012
    %2139 = vmatpush.bf16.msra.mxu0 %v2010
    %2140 = vmatpush.bf16.msra.mxu0 %v2008
    %2141 = vmatpush.bf16.msra.mxu0 %v2006
    %2142 = vmatmul.bf16.gmra.mxu0 %v1740
    %v2143 = vpop.f32.mrf.mxu0
    %v2144 = vadd.f32 %v1810, %v2143
    %v2145 = vpop.f32.mrf.mxu0
    %v2146 = vadd.f32 %v1810, %v2145
    %2147 = vdwg.mxu0
    %2148 = vmatpush.bf16.msra.mxu0 %v2036
    %2149 = vmatpush.bf16.msra.mxu0 %v2034
    %2150 = vmatpush.bf16.msra.mxu0 %v2032
    %2151 = vmatpush.bf16.msra.mxu0 %v2030
    %2152 = vmatpush.bf16.msra.mxu0 %v2028
    %2153 = vmatpush.bf16.msra.mxu0 %v2026
    %2154 = vmatpush.bf16.msra.mxu0 %v2024
    %2155 = vmatpush.bf16.msra.mxu0 %v2022
    %2156 = vmatmul.bf16.gmra.mxu0 %v1741
    %v2157 = vpop.f32.mrf.mxu0
    %v2158 = vadd.f32 %v2144, %v2157
    %v2159 = vpop.f32.mrf.mxu0
    %v2160 = vadd.f32 %v2146, %v2159
    %2161 = vdwg.mxu0
    %2162 = vmatpush.bf16.msra.mxu0 %v2052
    %2163 = vmatpush.bf16.msra.mxu0 %v2050
    %2164 = vmatpush.bf16.msra.mxu0 %v2048
    %2165 = vmatpush.bf16.msra.mxu0 %v2046
    %2166 = vmatpush.bf16.msra.mxu0 %v2044
    %2167 = vmatpush.bf16.msra.mxu0 %v2042
    %2168 = vmatpush.bf16.msra.mxu0 %v2040
    %2169 = vmatpush.bf16.msra.mxu0 %v2038
    %2170 = vmatmul.bf16.gmra.mxu0 %v1742
    %v2171 = vpop.f32.mrf.mxu0
    %v2172 = vadd.f32 %v2158, %v2171
    %v2173 = vpop.f32.mrf.mxu0
    %v2174 = vadd.f32 %v2160, %v2173
    %2175 = vdwg.mxu0
    %2176 = vmatpush.bf16.msra.mxu0 %v2068
    %2177 = vmatpush.bf16.msra.mxu0 %v2066
    %2178 = vmatpush.bf16.msra.mxu0 %v2064
    %2179 = vmatpush.bf16.msra.mxu0 %v2062
    %2180 = vmatpush.bf16.msra.mxu0 %v2060
    %2181 = vmatpush.bf16.msra.mxu0 %v2058
    %2182 = vmatpush.bf16.msra.mxu0 %v2056
    %2183 = vmatpush.bf16.msra.mxu0 %v2054
    %2184 = vmatmul.bf16.gmra.mxu0 %v1743
    %v2185 = vpop.f32.mrf.mxu0
    %v2186 = vadd.f32 %v2172, %v2185
    %v2187 = vpop.f32.mrf.mxu0
    %v2188 = vadd.f32 %v2174, %v2187
    %2189 = vdwg.mxu0
    %2190 = vmatpush.bf16.msra.mxu0 %v2021
    %2191 = vmatpush.bf16.msra.mxu0 %v2019
    %2192 = vmatpush.bf16.msra.mxu0 %v2017
    %2193 = vmatpush.bf16.msra.mxu0 %v2015
    %2194 = vmatpush.bf16.msra.mxu0 %v2013
    %2195 = vmatpush.bf16.msra.mxu0 %v2011
    %2196 = vmatpush.bf16.msra.mxu0 %v2009
    %2197 = vmatpush.bf16.msra.mxu0 %v2007
    %2198 = vmatmul.bf16.gmra.mxu0 %v1740
    %v2199 = vpop.f32.mrf.mxu0
    %v2200 = vadd.f32 %v1811, %v2199
    %v2201 = vpop.f32.mrf.mxu0
    %v2202 = vadd.f32 %v1811, %v2201
    %2203 = vdwg.mxu0
    %2204 = vmatpush.bf16.msra.mxu0 %v2037
    %2205 = vmatpush.bf16.msra.mxu0 %v2035
    %2206 = vmatpush.bf16.msra.mxu0 %v2033
    %2207 = vmatpush.bf16.msra.mxu0 %v2031
    %2208 = vmatpush.bf16.msra.mxu0 %v2029
    %2209 = vmatpush.bf16.msra.mxu0 %v2027
    %2210 = vmatpush.bf16.msra.mxu0 %v2025
    %2211 = vmatpush.bf16.msra.mxu0 %v2023
    %2212 = vmatmul.bf16.gmra.mxu0 %v1741
    %v2213 = vpop.f32.mrf.mxu0
    %v2214 = vadd.f32 %v2200, %v2213
    %v2215 = vpop.f32.mrf.mxu0
    %v2216 = vadd.f32 %v2202, %v2215
    %2217 = vdwg.mxu0
    %2218 = vmatpush.bf16.msra.mxu0 %v2053
    %2219 = vmatpush.bf16.msra.mxu0 %v2051
    %2220 = vmatpush.bf16.msra.mxu0 %v2049
    %2221 = vmatpush.bf16.msra.mxu0 %v2047
    %2222 = vmatpush.bf16.msra.mxu0 %v2045
    %2223 = vmatpush.bf16.msra.mxu0 %v2043
    %2224 = vmatpush.bf16.msra.mxu0 %v2041
    %2225 = vmatpush.bf16.msra.mxu0 %v2039
    %2226 = vmatmul.bf16.gmra.mxu0 %v1742
    %v2227 = vpop.f32.mrf.mxu0
    %v2228 = vadd.f32 %v2214, %v2227
    %v2229 = vpop.f32.mrf.mxu0
    %v2230 = vadd.f32 %v2216, %v2229
    %2231 = vdwg.mxu0
    %2232 = vmatpush.bf16.msra.mxu0 %v2069
    %2233 = vmatpush.bf16.msra.mxu0 %v2067
    %2234 = vmatpush.bf16.msra.mxu0 %v2065
    %2235 = vmatpush.bf16.msra.mxu0 %v2063
    %2236 = vmatpush.bf16.msra.mxu0 %v2061
    %2237 = vmatpush.bf16.msra.mxu0 %v2059
    %2238 = vmatpush.bf16.msra.mxu0 %v2057
    %2239 = vmatpush.bf16.msra.mxu0 %v2055
    %2240 = vmatmul.bf16.gmra.mxu0 %v1743
    %v2241 = vpop.f32.mrf.mxu0
    %v2242 = vadd.f32 %v2228, %v2241
    %v2243 = vpop.f32.mrf.mxu0
    %v2244 = vadd.f32 %v2230, %v2243
    %2245 = vdwg.mxu0
    %vm2246 = vcmp.gt.f32.partialorder %v2186, 0.0
    %vm2247 = vcmp.gt.f32.partialorder %v2242, 0.0
    %vm2248 = vcmp.gt.f32.partialorder %v2188, 0.0
    %vm2249 = vcmp.gt.f32.partialorder %v2244, 0.0
    %v2250 = vmul.f32 %v2186, 0.2
    %v2251 = vmul.f32 %v2242, 0.2
    %v2252 = vmul.f32 %v2188, 0.2
    %v2253 = vmul.f32 %v2244, 0.2
    %v2254 = vsel %vm2246, %v2186, %v2250
    %v2255 = vsel %vm2247, %v2242, %v2251
    %v2256 = vsel %vm2248, %v2188, %v2252
    %v2257 = vsel %vm2249, %v2244, %v2253
    %v2258 = vld [vmem:[%s5] sm:$0x3]
    %v2259 = vld [vmem:[#allocation2] sm:$0x1]
    %2261 = vset.pattern.permute.xlu0 0
    %2262 = vperm.xlu0 %2261, %v2259
    %v2263 = vpop.permute.xlu0 %2262
    %v2265 = vperm.slane %v2263, 0
    %v2267 = vperm.slane %v2258, 0
    %v2268 = vperm.slane %v2258, 1
    %2271 = vmatpush.xpose.msra.mxu0 0.0
    %2272 = vmatpush.xpose.msra.mxu0 0.0
    %2273 = vmatpush.xpose.msra.mxu0 0.0
    %2274 = vmatpush.xpose.msra.mxu0 0.0
    %2275 = vmatpush.xpose.msra.mxu0 0.0
    %2276 = vmatpush.xpose.msra.mxu0 0.0
    %2277 = vmatpush.xpose.msra.mxu0 0.0
    %2278 = vmatpush.xpose.msra.mxu0 0.0
    %2279 = vmatpush.xpose.msra.mxu0 0.0
    %2280 = vmatpush.xpose.msra.mxu0 0.0
    %2281 = vmatpush.xpose.msra.mxu0 0.0
    %2282 = vmatpush.xpose.msra.mxu0 0.0
    %2283 = vmatpush.xpose.msra.mxu0 0.0
    %2284 = vmatpush.xpose.msra.mxu0 0.0
    %2285 = vmatpush.xpose.msra.mxu0 %v2256
    %2286 = vmatpush.xpose.msra.mxu0 %v2254
    %2287 = vmatmul.f32.gmra.mxu0 %v2267
    %v2288 = vpop.f32.mrf.mxu0
    %v2289 = vadd.f32 %v2265, %v2288
    %2290 = vdwg.mxu0
    %2291 = vmatpush.xpose.msra.mxu0 0.0
    %2292 = vmatpush.xpose.msra.mxu0 0.0
    %2293 = vmatpush.xpose.msra.mxu0 0.0
    %2294 = vmatpush.xpose.msra.mxu0 0.0
    %2295 = vmatpush.xpose.msra.mxu0 0.0
    %2296 = vmatpush.xpose.msra.mxu0 0.0
    %2297 = vmatpush.xpose.msra.mxu0 0.0
    %2298 = vmatpush.xpose.msra.mxu0 0.0
    %2299 = vmatpush.xpose.msra.mxu0 0.0
    %2300 = vmatpush.xpose.msra.mxu0 0.0
    %2301 = vmatpush.xpose.msra.mxu0 0.0
    %2302 = vmatpush.xpose.msra.mxu0 0.0
    %2303 = vmatpush.xpose.msra.mxu0 0.0
    %2304 = vmatpush.xpose.msra.mxu0 0.0
    %2305 = vmatpush.xpose.msra.mxu0 %v2257
    %2306 = vmatpush.xpose.msra.mxu0 %v2255
    %2307 = vmatmul.f32.gmra.mxu0 %v2268
    %v2308 = vpop.f32.mrf.mxu0
    %v2309 = vadd.f32 %v2289, %v2308
    %2310 = vdwg.mxu0
    %v2311 = vsub.f32 0.0, %v2309
    %v2312 = vmul.f32 %v2311, 1.442695
    %v2313 = vpow.pop %v2312
    %v2314 = vadd.f32 %v2313, 1.0
    %v2315 = vrcp.pop %v2314
    %v2316 = vmul.f32 %v2314, %v2315
    %v2317 = vsub.f32 1.0, %v2316
    %v2318 = vmul.f32 %v2315, %v2317
    %v2319 = vadd.f32 %v2315, %v2318
    %vm2320 = vweird.f32 %v2314
    %vm2321 = vweird.f32 %v2315
    %vm2322 = vmor %vm2320, %vm2321
    %v2323 = vsel %vm2322, %v2315, %v2319
    %v2324 = vand.u32 2147483647, %v2314
    %vm2325 = vcmp.eq.f32.partialorder %v2324, 8.507059e+37
    %v2326 = vand.u32 %v2314, 2147483648
    %v2327 = vor.u32 1.1754944e-38, %v2326
    %v2328 = vsel %vm2325, %v2327, %v2323
    %v2329 = vmul.f32 1.0, %v2328
    %vm2330 = vcmask 122880
    %2331 = vst.msk [vmem:[#allocation11] sm:$0x1] %vm2330, %v2329
    // Predicated region
    $region46: #{tpu_custom_call.1} parent=1 // pred_check
      _
    $region47: #{tpu_custom_call.1} parent=1 // pred_check_branch
      %2333 = sbr.rel (0) target = $region49
    $region48: #{tpu_custom_call.1} parent=1 // pred_region
      %2335 = vsyncadd [#allocation5], 0
      %s2337 = sshll.u32 [#allocation11], 4
      %s2338 = int_to_ptr.vmem [resolvable:$true] %s2337
      %s2339 = sshll.u32 %s7, 4
      %s2340 = int_to_ptr.hbm [resolvable:$true] %s2339
      %2342 = dma.vmem_to_hbm [thread:$0]  %s2338, 16, %s2340, [#allocation5]
    $region49: #{tpu_custom_call.1} parent=1 // pred_fallthru
      _
    // Predicated region
    $region50: #{tpu_custom_call.1} parent=1 // pred_check
      _
    $region51: #{tpu_custom_call.1} parent=1 // pred_check_branch
      %2344 = sbr.rel (0) target = $region53
    $region52: #{tpu_custom_call.1} parent=1 // pred_region
      %2346 = dma.done [#allocation5], 16
    $region53: #{tpu_custom_call.1} parent=1 // pred_fallthru
      _
    %2347 = vsyncpa [#allocation4], 1
    %2348 = vsyncpa [#allocation7], 1
    %2349 = vsyncpa [#allocation10], 1
    %2350 = vsyncpa [#allocation5], 1

</llo_original>
